<compile_context>
chip_gen: v6e
topology: v6e:2x2x1
jax: 0.10.0
libtpu: 0.0.40
codegen_flags: <defaults>
</compile_context>

<pallas_src>
import jax
import jax.numpy as jnp
from jax import lax
from jax.experimental import pallas as pl
from jax.experimental.pallas import tpu as pltpu

NUM_BLOCKS = 4          # module default
IN_DIM = 119            # logical input feature dim
IN_PAD = 128            # padded input feature dim (lane multiple)
HID = 512               # hidden / output dim
EPS = 1e-5              # BatchNorm1d default eps
NUM_STACKS = 2          # formula_embedder_mean + formula_embedder_std


def formula_embedder_kernel(x_ref, w0_ref, wh_ref, gb0_ref, gbh_ref,
                            o_ref, h_ref):
    """One grid step = one hidden block of one stack.

    Grid: (stack s in [0, 2), hidden layer l in [0, 3)).

    x_ref   : (B, 128)          f32   padded input (resident across the grid)
    w0_ref  : (1, 128, 512)     bf16  initfc weight of stack s
    wh_ref  : (1, 1, 512, 512)  bf16  hidden weight of (stack s, layer l)
    gb0_ref : (1, 2, 512)       f32   initfc BN gamma/beta of stack s
    gbh_ref : (1, 1, 2, 512)    f32   hidden BN gamma/beta of (s, l)
    o_ref   : (1, B, 512)       f32   output slab of stack s
    h_ref   : (B, 512)          f32   carried activation (VMEM scratch)
    """
    l = pl.program_id(1)

    def batchnorm(h, gamma, beta):
        # Fused single-pass training-mode BN (biased batch variance, f32).
        mean = jnp.mean(h, axis=0, keepdims=True)
        mean_sq = jnp.mean(h * h, axis=0, keepdims=True)
        var = jnp.maximum(mean_sq - mean * mean, 0.0)   # guard f32 cancellation
        scale = gamma * lax.rsqrt(var + EPS)            # EUP slot (cheap)
        shift = beta - mean * scale
        return h * scale + shift

    # initfc: Linear(119->512) (bias cancels under training-mode BN) + BN.
    @pl.when(l == 0)
    def _():
        h0 = jnp.dot(x_ref[...].astype(jnp.bfloat16), w0_ref[0],
                     preferred_element_type=jnp.float32)
        gb0 = gb0_ref[0]                                 # (2, 512)
        h_ref[...] = batchnorm(h0, gb0[0:1], gb0[1:2])

    # hidden block l: ReLU -> Linear(512->512) -> BN (bf16 MXU operands).
    h = jnp.maximum(h_ref[...], 0.0).astype(jnp.bfloat16)
    h = jnp.dot(h, wh_ref[0, 0], preferred_element_type=jnp.float32)
    gbh = gbh_ref[0, 0]                                  # (2, 512)
    h = batchnorm(h, gbh[0:1], gbh[1:2])
    h_ref[...] = h

    @pl.when(l == pl.num_programs(1) - 1)
    def _():
        o_ref[0] = h.astype(o_ref.dtype)


def formula_embedder_pair(x, params):
    """x: (B, 119) f32 -> (mean_embedding, std_embedding), each (B, 512) f32."""
    assert x.ndim == 2 and x.shape[1] == IN_DIM
    B = x.shape[0]
    w0, _b0, wh, _bh, gb0, gbh = params   # biases are not used by the kernel
    nb = NUM_BLOCKS - 1

    # Explicit-zero pad 119 -> 128 (lane-aligned MXU operand); never rely on
    # uninitialized padding lanes.
    x_p = jnp.pad(x, ((0, 0), (0, IN_PAD - IN_DIM)))

    flops = 2 * NUM_STACKS * B * (IN_PAD * HID + nb * HID * HID)
    bytes_accessed = (w0.size * w0.dtype.itemsize
                      + wh.size * wh.dtype.itemsize
                      + gb0.size * gb0.dtype.itemsize
                      + gbh.size * gbh.dtype.itemsize
                      + x_p.size * x_p.dtype.itemsize
                      + NUM_STACKS * B * HID * 4)

    # Scoped-VMEM budget: double-buffered input/output blocks + carried scratch
    # + headroom (keeps the kernel batch-size-robust on v7x's 64 MiB VMEM).
    block_bytes = (x_p.size * 4            # x (resident)
                   + IN_PAD * HID * 2      # w0 block (bf16)
                   + HID * HID * 2         # wh block (bf16)
                   + 2 * HID * 4           # gb0 block
                   + 2 * HID * 4           # gbh block
                   + B * HID * 4)          # output block
    vmem_limit = int(min(100 * 2**20,
                         2 * block_bytes + B * HID * 4 + (4 << 20)))

    out = pl.pallas_call(
        formula_embedder_kernel,
        out_shape=jax.ShapeDtypeStruct((NUM_STACKS, B, HID), jnp.float32),
        grid_spec=pltpu.PrefetchScalarGridSpec(
            num_scalar_prefetch=0,
            grid=(NUM_STACKS, nb),
            in_specs=[
                pl.BlockSpec((B, IN_PAD), lambda s, l: (0, 0)),
                pl.BlockSpec((1, IN_PAD, HID), lambda s, l: (s, 0, 0)),
                pl.BlockSpec((1, 1, HID, HID), lambda s, l: (s, l, 0, 0)),
                pl.BlockSpec((1, 2, HID), lambda s, l: (s, 0, 0)),
                pl.BlockSpec((1, 1, 2, HID), lambda s, l: (s, l, 0, 0)),
            ],
            out_specs=pl.BlockSpec((1, B, HID), lambda s, l: (s, 0, 0)),
            scratch_shapes=[pltpu.VMEM((B, HID), jnp.float32)],
        ),
        compiler_params=pltpu.CompilerParams(
            dimension_semantics=("parallel", "arbitrary"),
            vmem_limit_bytes=vmem_limit),
        cost_estimate=pl.CostEstimate(
            flops=flops,
            transcendentals=NUM_STACKS * NUM_BLOCKS * HID,  # rsqrt per BN feat
            bytes_accessed=bytes_accessed),
    )(x_p, w0, wh, gb0, gbh)
    return out[0], out[1]


def init_params(key):
    """Deterministic synthetic parameters, mean/std stacks on a leading axis.

    Weights are stored in bf16 (HBM-traffic optimization).  Linear biases are
    generated but only the pure-JAX reference consumes them: a constant bias
    cancels exactly under training-mode BatchNorm."""
    nb = NUM_BLOCKS - 1
    ks = jax.random.split(key, 6)
    # Linear(119, 512) weight stored (in, out), rows 119..127 zero-padded.
    w0_logical = 0.05 * jax.random.normal(
        ks[0], (NUM_STACKS, IN_DIM, HID), jnp.float32)
    w0 = (jnp.zeros((NUM_STACKS, IN_PAD, HID), jnp.float32)
          .at[:, :IN_DIM].set(w0_logical)
          .astype(jnp.bfloat16))
    b0 = 0.05 * jax.random.normal(ks[1], (NUM_STACKS, HID), jnp.float32)
    # Hidden Linear(512, 512) x (num_blocks - 1), stacked per stack.
    wh = (0.05 * jax.random.normal(
        ks[2], (NUM_STACKS, nb, HID, HID), jnp.float32)).astype(jnp.bfloat16)
    bh = 0.05 * jax.random.normal(ks[3], (NUM_STACKS, nb, HID), jnp.float32)
    # BatchNorm gamma/beta, packed as [..., 0, :] = gamma, [..., 1, :] = beta.
    gammas = 1.0 + 0.1 * jax.random.normal(
        ks[4], (NUM_STACKS, NUM_BLOCKS, HID), jnp.float32)
    betas = 0.1 * jax.random.normal(
        ks[5], (NUM_STACKS, NUM_BLOCKS, HID), jnp.float32)
    gb = jnp.stack([gammas, betas], axis=2)   # (2, NUM_BLOCKS, 2, HID)
    gb0 = gb[:, 0]                            # (2, 2, HID)   initfc BN
    gbh = gb[:, 1:]                           # (2, nb, 2, HID) hidden BNs
    return (w0, b0, wh, bh, gb0, gbh)


def ref_forward(x, params, stack):
    """Pure-JAX reference of the PyTorch training-mode forward for one stack.

    Uses the same bf16 weights / bf16 matmul activations (f32 accumulation) as
    the kernel and *includes* the Linear biases, which the kernel omits
    because they cancel exactly under training-mode BatchNorm."""
    w0, b0, wh, bh, gb0, gbh = params
    w0s, b0s = w0[stack], b0[stack]
    whs, bhs = wh[stack], bh[stack]
    g0, gh = gb0[stack], gbh[stack]

    def bn(h, gamma, beta):
        m = h.mean(axis=0, keepdims=True)
        v = ((h - m) ** 2).mean(axis=0, keepdims=True)
        return gamma * (h - m) / jnp.sqrt(v + EPS) + beta

    h = jnp.dot(x.astype(jnp.bfloat16), w0s[:IN_DIM],
                preferred_element_type=jnp.float32) + b0s
    h = bn(h, g0[0:1], g0[1:2])
    for i in range(NUM_BLOCKS - 1):
        h = jnp.maximum(h, 0.0)
        h = jnp.dot(h.astype(jnp.bfloat16), whs[i],
                    preferred_element_type=jnp.float32) + bhs[i]
        h = bn(h, gh[i, 0:1], gh[i, 1:2])
    return h


if __name__ == "__main__":
    key = jax.random.PRNGKey(0)
    kx, kp = jax.random.split(key)

    B = 8
    x = jax.random.normal(kx, (B, IN_DIM), jnp.float32)
    params = init_params(kp)

    fe_mean, fe_std = formula_embedder_pair(x, params)
    fe_mean = jax.block_until_ready(fe_mean)
    fe_std = jax.block_until_ready(fe_std)

    assert fe_mean.shape == (B, HID), fe_mean.shape
    assert fe_std.shape == (B, HID), fe_std.shape

    ref_mean = ref_forward(x, params, 0)
    ref_std = ref_forward(x, params, 1)
    err = max(float(jnp.max(jnp.abs(fe_mean - ref_mean))),
              float(jnp.max(jnp.abs(fe_std - ref_std))))
    assert err < 3e-3, f"max abs error {err}"

    print("KERNEL_OK")
</pallas_src>

<mosaic_0001>
module attributes {stable_mosaic.version = 11 : i64} {
  func.func @formula_embedder_kernel(%arg0: i32, %arg1: i32, %arg2: memref<8x128xf32, #tpu.memory_space<vmem>>, %arg3: memref<1x128x512xbf16, #tpu.memory_space<vmem>>, %arg4: memref<1x1x512x512xbf16, #tpu.memory_space<vmem>>, %arg5: memref<1x2x512xf32, #tpu.memory_space<vmem>>, %arg6: memref<1x1x2x512xf32, #tpu.memory_space<vmem>>, %arg7: memref<1x8x512xf32, #tpu.memory_space<vmem>>, %arg8: memref<8x512xf32, #tpu.memory_space<vmem>>) attributes {dimension_semantics = [#tpu.dimension_semantics<parallel>, #tpu.dimension_semantics<arbitrary>], iteration_bounds = array<i64: 2, 3>, scalar_prefetch = 0 : i64, scratch_operands = 1 : i64, tpu.core_type = #tpu.core_type<tc>, window_params = [{pipeline_mode = #tpu.pipeline_mode<synchronous>, transform_indices = @transform_0, window_bounds = array<i64: 8, 128>}, {transform_indices = @transform_1, window_bounds = array<i64: 1, 128, 512>}, {transform_indices = @transform_2, window_bounds = array<i64: 1, 1, 512, 512>}, {transform_indices = @transform_3, window_bounds = array<i64: 1, 2, 512>}, {transform_indices = @transform_4, window_bounds = array<i64: 1, 1, 2, 512>}, {transform_indices = @transform_5, window_bounds = array<i64: 1, 8, 512>}]} {
    %c0_i32 = arith.constant 0 : i32
    %0 = arith.cmpi eq, %arg1, %c0_i32 : i32
    %1 = arith.extui %0 : i1 to i32
    %c0_i32_0 = arith.constant 0 : i32
    %2 = arith.cmpi ne, %1, %c0_i32_0 : i32
    scf.if %2 {
      %c0_20 = arith.constant 0 : index
      %c0_21 = arith.constant 0 : index
      %41 = vector.load %arg2[%c0_20, %c0_21] : memref<8x128xf32, #tpu.memory_space<vmem>>, vector<8x128xf32>
      %42 = arith.truncf %41 : vector<8x128xf32> to vector<8x128xbf16>
      %c0_22 = arith.constant 0 : index
      %c0_23 = arith.constant 0 : index
      %c0_24 = arith.constant 0 : index
      %43 = vector.load %arg3[%c0_22, %c0_23, %c0_24] : memref<1x128x512xbf16, #tpu.memory_space<vmem>>, vector<1x128x512xbf16>
      %44 = vector.shape_cast %43 : vector<1x128x512xbf16> to vector<128x512xbf16>
      %cst_25 = arith.constant dense<0.000000e+00> : vector<8x512xf32>
      %45 = tpu.matmul %42, %44, %cst_25 {dimension_numbers = #tpu.dot_dimension_numbers<[1], [0], [0], [1], [0, 0, 1, 1], [], []>} : vector<8x128xbf16>, vector<128x512xbf16>, vector<8x512xf32> -> vector<8x512xf32>
      %c0_26 = arith.constant 0 : index
      %c0_27 = arith.constant 0 : index
      %c0_28 = arith.constant 0 : index
      %46 = vector.load %arg5[%c0_26, %c0_27, %c0_28] : memref<1x2x512xf32, #tpu.memory_space<vmem>>, vector<1x2x512xf32>
      %47 = vector.shape_cast %46 : vector<1x2x512xf32> to vector<2x512xf32>
      %48 = vector.extract_strided_slice %47 {offsets = [0, 0], sizes = [1, 512], strides = [1, 1]} : vector<2x512xf32> to vector<1x512xf32>
      %49 = vector.extract_strided_slice %47 {offsets = [1, 0], sizes = [1, 512], strides = [1, 1]} : vector<2x512xf32> to vector<1x512xf32>
      %cst_29 = arith.constant dense<0.000000e+00> : vector<512xf32>
      %50 = vector.multi_reduction <add>, %45, %cst_29 [0] : vector<8x512xf32> to vector<512xf32>
      %51 = vector.shape_cast %50 : vector<512xf32> to vector<1x512xf32>
      %cst_30 = arith.constant 8.000000e+00 : f32
      %52 = vector.broadcast %cst_30 : f32 to vector<1x512xf32>
      %53 = arith.divf %51, %52 : vector<1x512xf32>
      %54 = arith.mulf %45, %45 : vector<8x512xf32>
      %cst_31 = arith.constant dense<0.000000e+00> : vector<512xf32>
      %55 = vector.multi_reduction <add>, %54, %cst_31 [0] : vector<8x512xf32> to vector<512xf32>
      %56 = vector.shape_cast %55 : vector<512xf32> to vector<1x512xf32>
      %cst_32 = arith.constant 8.000000e+00 : f32
      %57 = vector.broadcast %cst_32 : f32 to vector<1x512xf32>
      %58 = arith.divf %56, %57 : vector<1x512xf32>
      %59 = arith.mulf %53, %53 : vector<1x512xf32>
      %60 = arith.subf %58, %59 : vector<1x512xf32>
      %cst_33 = arith.constant 0.000000e+00 : f32
      %61 = vector.broadcast %cst_33 : f32 to vector<1x512xf32>
      %62 = arith.maximumf %60, %61 : vector<1x512xf32>
      %cst_34 = arith.constant 9.99999974E-6 : f32
      %63 = vector.broadcast %cst_34 : f32 to vector<1x512xf32>
      %64 = arith.addf %62, %63 : vector<1x512xf32>
      %65 = math.rsqrt %64 : vector<1x512xf32>
      %66 = arith.mulf %48, %65 : vector<1x512xf32>
      %67 = arith.mulf %53, %66 : vector<1x512xf32>
      %68 = arith.subf %49, %67 : vector<1x512xf32>
      %69 = vector.broadcast %66 : vector<1x512xf32> to vector<8x512xf32>
      %70 = arith.mulf %45, %69 : vector<8x512xf32>
      %71 = vector.broadcast %68 : vector<1x512xf32> to vector<8x512xf32>
      %72 = arith.addf %70, %71 : vector<8x512xf32>
      %c0_35 = arith.constant 0 : index
      %c0_36 = arith.constant 0 : index
      %73 = vector.load %arg8[%c0_35, %c0_36] : memref<8x512xf32, #tpu.memory_space<vmem>>, vector<8x512xf32>
      tpu.vector_store %arg8[%c0_35, %c0_36], %72 {strides = array<i32>} : memref<8x512xf32, #tpu.memory_space<vmem>>, vector<8x512xf32>,
    } else {
    }
    %c0 = arith.constant 0 : index
    %c0_1 = arith.constant 0 : index
    %3 = vector.load %arg8[%c0, %c0_1] : memref<8x512xf32, #tpu.memory_space<vmem>>, vector<8x512xf32>
    %cst = arith.constant 0.000000e+00 : f32
    %4 = vector.broadcast %cst : f32 to vector<8x512xf32>
    %5 = arith.maximumf %3, %4 : vector<8x512xf32>
    %6 = arith.truncf %5 : vector<8x512xf32> to vector<8x512xbf16>
    %c0_2 = arith.constant 0 : index
    %c0_3 = arith.constant 0 : index
    %c0_4 = arith.constant 0 : index
    %c0_5 = arith.constant 0 : index
    %7 = vector.load %arg4[%c0_2, %c0_3, %c0_4, %c0_5] : memref<1x1x512x512xbf16, #tpu.memory_space<vmem>>, vector<1x1x512x512xbf16>
    %8 = vector.shape_cast %7 : vector<1x1x512x512xbf16> to vector<512x512xbf16>
    %cst_6 = arith.constant dense<0.000000e+00> : vector<8x512xf32>
    %9 = tpu.matmul %6, %8, %cst_6 {dimension_numbers = #tpu.dot_dimension_numbers<[1], [0], [0], [1], [0, 0, 1, 1], [], []>} : vector<8x512xbf16>, vector<512x512xbf16>, vector<8x512xf32> -> vector<8x512xf32>
    %c0_7 = arith.constant 0 : index
    %c0_8 = arith.constant 0 : index
    %c0_9 = arith.constant 0 : index
    %c0_10 = arith.constant 0 : index
    %10 = vector.load %arg6[%c0_7, %c0_8, %c0_9, %c0_10] : memref<1x1x2x512xf32, #tpu.memory_space<vmem>>, vector<1x1x2x512xf32>
    %11 = vector.shape_cast %10 : vector<1x1x2x512xf32> to vector<2x512xf32>
    %12 = vector.extract_strided_slice %11 {offsets = [0, 0], sizes = [1, 512], strides = [1, 1]} : vector<2x512xf32> to vector<1x512xf32>
    %13 = vector.extract_strided_slice %11 {offsets = [1, 0], sizes = [1, 512], strides = [1, 1]} : vector<2x512xf32> to vector<1x512xf32>
    %cst_11 = arith.constant dense<0.000000e+00> : vector<512xf32>
    %14 = vector.multi_reduction <add>, %9, %cst_11 [0] : vector<8x512xf32> to vector<512xf32>
    %15 = vector.shape_cast %14 : vector<512xf32> to vector<1x512xf32>
    %cst_12 = arith.constant 8.000000e+00 : f32
    %16 = vector.broadcast %cst_12 : f32 to vector<1x512xf32>
    %17 = arith.divf %15, %16 : vector<1x512xf32>
    %18 = arith.mulf %9, %9 : vector<8x512xf32>
    %cst_13 = arith.constant dense<0.000000e+00> : vector<512xf32>
    %19 = vector.multi_reduction <add>, %18, %cst_13 [0] : vector<8x512xf32> to vector<512xf32>
    %20 = vector.shape_cast %19 : vector<512xf32> to vector<1x512xf32>
    %cst_14 = arith.constant 8.000000e+00 : f32
    %21 = vector.broadcast %cst_14 : f32 to vector<1x512xf32>
    %22 = arith.divf %20, %21 : vector<1x512xf32>
    %23 = arith.mulf %17, %17 : vector<1x512xf32>
    %24 = arith.subf %22, %23 : vector<1x512xf32>
    %cst_15 = arith.constant 0.000000e+00 : f32
    %25 = vector.broadcast %cst_15 : f32 to vector<1x512xf32>
    %26 = arith.maximumf %24, %25 : vector<1x512xf32>
    %cst_16 = arith.constant 9.99999974E-6 : f32
    %27 = vector.broadcast %cst_16 : f32 to vector<1x512xf32>
    %28 = arith.addf %26, %27 : vector<1x512xf32>
    %29 = math.rsqrt %28 : vector<1x512xf32>
    %30 = arith.mulf %12, %29 : vector<1x512xf32>
    %31 = arith.mulf %17, %30 : vector<1x512xf32>
    %32 = arith.subf %13, %31 : vector<1x512xf32>
    %33 = vector.broadcast %30 : vector<1x512xf32> to vector<8x512xf32>
    %34 = arith.mulf %9, %33 : vector<8x512xf32>
    %35 = vector.broadcast %32 : vector<1x512xf32> to vector<8x512xf32>
    %36 = arith.addf %34, %35 : vector<8x512xf32>
    %c0_17 = arith.constant 0 : index
    %c0_18 = arith.constant 0 : index
    %37 = vector.load %arg8[%c0_17, %c0_18] : memref<8x512xf32, #tpu.memory_space<vmem>>, vector<8x512xf32>
    tpu.vector_store %arg8[%c0_17, %c0_18], %36 {strides = array<i32>} : memref<8x512xf32, #tpu.memory_space<vmem>>, vector<8x512xf32>,
    %c2_i32 = arith.constant 2 : i32
    %38 = arith.cmpi eq, %arg1, %c2_i32 : i32
    %39 = arith.extui %38 : i1 to i32
    %c0_i32_19 = arith.constant 0 : i32
    %40 = arith.cmpi ne, %39, %c0_i32_19 : i32
    scf.if %40 {
      %c0_20 = arith.constant 0 : index
      %c0_21 = arith.constant 0 : index
      %c0_22 = arith.constant 0 : index
      %41 = vector.load %arg7[%c0_20, %c0_21, %c0_22] : memref<1x8x512xf32, #tpu.memory_space<vmem>>, vector<1x8x512xf32>
      %42 = vector.shape_cast %41 : vector<1x8x512xf32> to vector<8x512xf32>
      %43 = vector.shape_cast %36 : vector<8x512xf32> to vector<1x8x512xf32>
      tpu.vector_store %arg7[%c0_20, %c0_21, %c0_22], %43 {strides = array<i32>} : memref<1x8x512xf32, #tpu.memory_space<vmem>>, vector<1x8x512xf32>,
    } else {
    }
    return
  }
  func.func @transform_0(%arg0: i32, %arg1: i32) -> (i32, i32) {
    %c0_i32 = arith.constant 0 : i32
    %c0_i32_0 = arith.constant 0 : i32
    %c0_i32_1 = arith.constant 0 : i32
    return %c0_i32, %c0_i32_0 : i32, i32
  }
  func.func @transform_1(%arg0: i32, %arg1: i32) -> (i32, i32, i32) {
    %c0_i32 = arith.constant 0 : i32
    %c0_i32_0 = arith.constant 0 : i32
    %c0_i32_1 = arith.constant 0 : i32
    return %arg0, %c0_i32, %c0_i32_0 : i32, i32, i32
  }
  func.func @transform_2(%arg0: i32, %arg1: i32) -> (i32, i32, i32, i32) {
    %c0_i32 = arith.constant 0 : i32
    %c0_i32_0 = arith.constant 0 : i32
    %c0_i32_1 = arith.constant 0 : i32
    return %arg0, %arg1, %c0_i32, %c0_i32_0 : i32, i32, i32, i32
  }
  func.func @transform_3(%arg0: i32, %arg1: i32) -> (i32, i32, i32) {
    %c0_i32 = arith.constant 0 : i32
    %c0_i32_0 = arith.constant 0 : i32
    %c0_i32_1 = arith.constant 0 : i32
    return %arg0, %c0_i32, %c0_i32_0 : i32, i32, i32
  }
  func.func @transform_4(%arg0: i32, %arg1: i32) -> (i32, i32, i32, i32) {
    %c0_i32 = arith.constant 0 : i32
    %c0_i32_0 = arith.constant 0 : i32
    %c0_i32_1 = arith.constant 0 : i32
    return %arg0, %arg1, %c0_i32, %c0_i32_0 : i32, i32, i32, i32
  }
  func.func @transform_5(%arg0: i32, %arg1: i32) -> (i32, i32, i32) {
    %c0_i32 = arith.constant 0 : i32
    %c0_i32_0 = arith.constant 0 : i32
    %c0_i32_1 = arith.constant 0 : i32
    return %arg0, %c0_i32, %c0_i32_0 : i32, i32, i32
  }
}

</mosaic_0001>

<llo_original>
// kernel: tpu_custom_call.1
$region0: #{tpu_custom_call.1}
  #allocation0 [shape = 'u32[]', space=smem, size = 0x4, offset = 0x4, fixed_abs, tag = 'smem constant byte address 0x4 - core index']
  #allocation1 [shape = 'u32[144,128]{1,0:T(1,128)}', space=vmem, size = 0x12000, scoped, tag = 'internal scratch']
  #allocation2 [shape = 'f32[8,512]{1,0:T(8,128)}', space=vmem, size = 0x4000, scoped, tag = 'scratch operand']
  %s0 = inlined_call_operand.hbm [shape: f32[8,128], index: 0, kind: input, shape index: {}]
  %s1 = inlined_call_operand.hbm [shape: bf16[2,128,512], index: 1, kind: input, shape index: {}]
  %s2 = inlined_call_operand.hbm [shape: bf16[2,3,512,512], index: 2, kind: input, shape index: {}]
  %s3 = inlined_call_operand.hbm [shape: f32[2,2,512], index: 3, kind: input, shape index: {}]
  %s4 = inlined_call_operand.hbm [shape: f32[2,3,2,512], index: 4, kind: input, shape index: {}]
  %s5 = inlined_call_operand.hbm [shape: f32[2,8,512], index: 5, kind: output, shape index: {}]
  %s6 = sld [smem:[#allocation0]]
  $region81: #{tpu_custom_call.1} parent=0
    _
  %s8 = ssub.s32 1, %s6
  %s9 = scalar_select 0, %s8, %s6
  $region1: #{tpu_custom_call.1} parent=0
    #allocation3 [shape = 'u8[4096]{0}', space=vmem, size = 0x1000, scoped, tag = 'input window, operand 0, single buffered']
    #allocation4 [shape = 's32[2]{0}', space=sflag, size = 0x8, scoped, tag = 'scoped memory for tpu_custom_call.1']
    #allocation5 [shape = 's32[2]{0}', space=sflag, size = 0x8, scoped, tag = 'scoped memory for tpu_custom_call.1']
    #allocation6 [shape = 'u8[262144]{0}', space=vmem, size = 0x40000, scoped, tag = 'input window, operand 1']
    #allocation7 [shape = 's32[2]{0}', space=sflag, size = 0x8, scoped, tag = 'scoped memory for tpu_custom_call.1']
    #allocation8 [shape = 'u8[1048576]{0}', space=vmem, size = 0x100000, scoped, tag = 'input window, operand 2']
    #allocation9 [shape = 'u8[8192]{0}', space=vmem, size = 0x2000, scoped, tag = 'input window, operand 3']
    #allocation10 [shape = 's32[2]{0}', space=sflag, size = 0x8, scoped, tag = 'scoped memory for tpu_custom_call.1']
    #allocation11 [shape = 'u8[8192]{0}', space=vmem, size = 0x2000, scoped, tag = 'input window, operand 4']
    #allocation12 [shape = 'u8[32768]{0}', space=vmem, size = 0x8000, scoped, tag = 'output window, operand 0']
    %10 = vsyncpa [#allocation4], 0
    %11 = vsyncpa [#allocation7], 0
    %s12 = scalar_lea.sflag [#allocation7], 1
    %13 = vsyncpa %s12, 0
    %14 = vsyncpa [#allocation10], 0
    %s15 = scalar_lea.sflag [#allocation10], 1
    %16 = vsyncpa %s15, 0
    %17 = vsyncpa [#allocation5], 0
    %s18 = scalar_lea.sflag [#allocation5], 1
    %19 = vsyncpa %s18, 0
    loop: start=0, step=1, limit=8
    $region2: #{tpu_custom_call.1} parent=1 // loop_pre_header
      _
    $region3: #{tpu_custom_call.1} parent=1 // loop_header
      %s21 = sphi 0, %s25
      %p22 = scmp.ge.s32.totalorder %s21, 8
      %s28 = sphi 0, %s40
      %s29 = sphi 0, %s36
      %s30 = sphi 0, %s28
      %s31 = sphi 0, %s29
      %s32 = sphi 0, %s30
      %s33 = sphi 0, %s31
      %s41 = sphi 0, %s41
      %s43 = sphi 0, %s41
      %s44 = sphi 0, %s43
      %s58 = sphi 0, %s44
      %s64 = sphi 0, %s66
      %s67 = sphi 0, %s64
      %s68 = sphi 0, %s67
      %s84 = sphi 0, %s68
      %s92 = sphi 0, %s94
      %s95 = sphi 0, %s92
      %s96 = sphi 0, %s95
      %s112 = sphi 0, %s96
      %s118 = sphi 0, %s120
      %s121 = sphi 0, %s118
      %s122 = sphi 0, %s121
      %s138 = sphi 0, %s122
      %s146 = sphi 0, %s148
      %s149 = sphi 0, %s146
      %s150 = sphi 0, %s149
      %s166 = sphi 0, %s150
      %s172 = sphi 0, %s174
      %s175 = sphi 0, %s172
      %s176 = sphi 0, %s175
      %s192 = sphi 0, %s176
    $region4: #{tpu_custom_call.1} parent=1 // loop_header_branch
      %24 = sbr.rel (%p22) target = $region8
    $region5: #{tpu_custom_call.1} parent=1 // loop_body
      %s26 = ssub.s32 %s21, 1
      %s27 = ssub.s32 %s21, 2
      %s34 = sadd.s32 1, %s29
      %p35 = scmp.ge.s32.totalorder %s34, 3
      %s36 = scalar_select %p35, 0, %s34
      %s37 = sadd.s32 1, %s28
      %s38 = scalar_select %p35, %s37, %s28
      %p39 = scmp.ge.s32.totalorder %s38, 2
      %s40 = scalar_select %p39, 0, %s38
      %s42 = sadd.s32 %s41, 1
      %p45 = scmp.eq.s32.totalorder %s21, 5
      %p46 = scmp.ne.s32.totalorder %s41, %s43
      %p47 = scmp.eq.s32.totalorder %s21, 0
      %p48 = por %p46, %p47
      %p49 = scmp.ne.s32.totalorder %s41, %s43
      %p50 = scmp.eq.s32.totalorder %s26, 5
      %p51 = por %p49, %p50
      %p52 = scmp.ne.s32.totalorder %s43, %s44
      %p53 = scmp.eq.s32.totalorder %s26, 0
      %p54 = por %p52, %p53
      %p55 = scmp.ne.s32.totalorder %s43, %s44
      %p56 = scmp.eq.s32.totalorder %s27, 5
      %p57 = por %p55, %p56
      %p59 = scmp.ne.s32.totalorder %s44, %s58
      %p60 = scmp.eq.s32.totalorder %s27, 0
      %p61 = por %p59, %p60
      %s62 = ssub.s32 %s28, %s40
      %p63 = scmp.eq.s32.totalorder %s62, 0
      %s65 = sadd.s32 %s64, 1
      %s66 = scalar_select %p63, %s64, %s65
      %p69 = pneg %p63
      %p70 = scmp.eq.s32.totalorder %s21, 5
      %p71 = por %p69, %p70
      %p72 = scmp.ne.s32.totalorder %s64, %s67
      %p73 = scmp.eq.s32.totalorder %s21, 0
      %p74 = por %p72, %p73
      %p75 = scmp.ne.s32.totalorder %s64, %s67
      %p76 = scmp.eq.s32.totalorder %s26, 5
      %p77 = por %p75, %p76
      %p78 = scmp.ne.s32.totalorder %s67, %s68
      %p79 = scmp.eq.s32.totalorder %s26, 0
      %p80 = por %p78, %p79
      %p81 = scmp.ne.s32.totalorder %s67, %s68
      %p82 = scmp.eq.s32.totalorder %s27, 5
      %p83 = por %p81, %p82
      %p85 = scmp.ne.s32.totalorder %s68, %s84
      %p86 = scmp.eq.s32.totalorder %s27, 0
      %p87 = por %p85, %p86
      %s88 = ssub.s32 %s28, %s40
      %s89 = ssub.s32 %s29, %s36
      %s90 = sor.u32 %s88, %s89
      %p91 = scmp.eq.s32.totalorder %s90, 0
      %s93 = sadd.s32 %s92, 1
      %s94 = scalar_select %p91, %s92, %s93
      %p97 = pneg %p91
      %p98 = scmp.eq.s32.totalorder %s21, 5
      %p99 = por %p97, %p98
      %p100 = scmp.ne.s32.totalorder %s92, %s95
      %p101 = scmp.eq.s32.totalorder %s21, 0
      %p102 = por %p100, %p101
      %p103 = scmp.ne.s32.totalorder %s92, %s95
      %p104 = scmp.eq.s32.totalorder %s26, 5
      %p105 = por %p103, %p104
      %p106 = scmp.ne.s32.totalorder %s95, %s96
      %p107 = scmp.eq.s32.totalorder %s26, 0
      %p108 = por %p106, %p107
      %p109 = scmp.ne.s32.totalorder %s95, %s96
      %p110 = scmp.eq.s32.totalorder %s27, 5
      %p111 = por %p109, %p110
      %p113 = scmp.ne.s32.totalorder %s96, %s112
      %p114 = scmp.eq.s32.totalorder %s27, 0
      %p115 = por %p113, %p114
      %s116 = ssub.s32 %s28, %s40
      %p117 = scmp.eq.s32.totalorder %s116, 0
      %s119 = sadd.s32 %s118, 1
      %s120 = scalar_select %p117, %s118, %s119
      %p123 = pneg %p117
      %p124 = scmp.eq.s32.totalorder %s21, 5
      %p125 = por %p123, %p124
      %p126 = scmp.ne.s32.totalorder %s118, %s121
      %p127 = scmp.eq.s32.totalorder %s21, 0
      %p128 = por %p126, %p127
      %p129 = scmp.ne.s32.totalorder %s118, %s121
      %p130 = scmp.eq.s32.totalorder %s26, 5
      %p131 = por %p129, %p130
      %p132 = scmp.ne.s32.totalorder %s121, %s122
      %p133 = scmp.eq.s32.totalorder %s26, 0
      %p134 = por %p132, %p133
      %p135 = scmp.ne.s32.totalorder %s121, %s122
      %p136 = scmp.eq.s32.totalorder %s27, 5
      %p137 = por %p135, %p136
      %p139 = scmp.ne.s32.totalorder %s122, %s138
      %p140 = scmp.eq.s32.totalorder %s27, 0
      %p141 = por %p139, %p140
      %s142 = ssub.s32 %s28, %s40
      %s143 = ssub.s32 %s29, %s36
      %s144 = sor.u32 %s142, %s143
      %p145 = scmp.eq.s32.totalorder %s144, 0
      %s147 = sadd.s32 %s146, 1
      %s148 = scalar_select %p145, %s146, %s147
      %p151 = pneg %p145
      %p152 = scmp.eq.s32.totalorder %s21, 5
      %p153 = por %p151, %p152
      %p154 = scmp.ne.s32.totalorder %s146, %s149
      %p155 = scmp.eq.s32.totalorder %s21, 0
      %p156 = por %p154, %p155
      %p157 = scmp.ne.s32.totalorder %s146, %s149
      %p158 = scmp.eq.s32.totalorder %s26, 5
      %p159 = por %p157, %p158
      %p160 = scmp.ne.s32.totalorder %s149, %s150
      %p161 = scmp.eq.s32.totalorder %s26, 0
      %p162 = por %p160, %p161
      %p163 = scmp.ne.s32.totalorder %s149, %s150
      %p164 = scmp.eq.s32.totalorder %s27, 5
      %p165 = por %p163, %p164
      %p167 = scmp.ne.s32.totalorder %s150, %s166
      %p168 = scmp.eq.s32.totalorder %s27, 0
      %p169 = por %p167, %p168
      %s170 = ssub.s32 %s28, %s40
      %p171 = scmp.eq.s32.totalorder %s170, 0
      %s173 = sadd.s32 %s172, 1
      %s174 = scalar_select %p171, %s172, %s173
      %p177 = pneg %p171
      %p178 = scmp.eq.s32.totalorder %s21, 5
      %p179 = por %p177, %p178
      %p180 = scmp.ne.s32.totalorder %s172, %s175
      %p181 = scmp.eq.s32.totalorder %s21, 0
      %p182 = por %p180, %p181
      %p183 = scmp.ne.s32.totalorder %s172, %s175
      %p184 = scmp.eq.s32.totalorder %s26, 5
      %p185 = por %p183, %p184
      %p186 = scmp.ne.s32.totalorder %s175, %s176
      %p187 = scmp.eq.s32.totalorder %s26, 0
      %p188 = por %p186, %p187
      %p189 = scmp.ne.s32.totalorder %s175, %s176
      %p190 = scmp.eq.s32.totalorder %s27, 5
      %p191 = por %p189, %p190
      %p193 = scmp.ne.s32.totalorder %s176, %s192
      %p194 = scmp.eq.s32.totalorder %s27, 0
      %p195 = por %p193, %p194
      %p196 = scmp.le.s32.totalorder 1, %s21
      %p197 = scmp.lt.s32.totalorder %s21, 7
      %p198 = pnand %p196, %p197
      %p199 = pneg %p198
      // Predicated region
      $region9: #{tpu_custom_call.1} parent=5 // pred_check
        _
      $region10: #{tpu_custom_call.1} parent=5 // pred_check_branch
        %201 = sbr.rel (%p198) target = $region12
      $region11: #{tpu_custom_call.1} parent=5 // pred_region
        %s202 = ssub.s32 %s21, 1
        // Predicated region
        $region13: #{tpu_custom_call.1} parent=11 // pred_check
          %p203 = pneg %p54
        $region14: #{tpu_custom_call.1} parent=11 // pred_check_branch
          %205 = sbr.rel (%p203) target = $region16
        $region15: #{tpu_custom_call.1} parent=11 // pred_region
          %s207 = ssub.s32 128, 128
          %208 = vsyncadd [#allocation4], %s207
          %s210 = sshll.u32 [#allocation3], 4
          %s211 = int_to_ptr.vmem [resolvable:$true] %s210
          %213 = dma.hbm_to_vmem [thread:$0]  %s0, 128, %s211, [#allocation4]
        $region16: #{tpu_custom_call.1} parent=11 // pred_fallthru
          _
      $region12: #{tpu_custom_call.1} parent=5 // pred_fallthru
        _
      %p214 = scmp.lt.s32.totalorder %s21, 6
      // Predicated region
      $region17: #{tpu_custom_call.1} parent=5 // pred_check
        %p215 = pneg %p214
      $region18: #{tpu_custom_call.1} parent=5 // pred_check_branch
        %217 = sbr.rel (%p215) target = $region20
      $region19: #{tpu_custom_call.1} parent=5 // pred_region
        // Predicated region
        $region21: #{tpu_custom_call.1} parent=19 // pred_check
          %p218 = pneg %p74
        $region22: #{tpu_custom_call.1} parent=19 // pred_check_branch
          %220 = sbr.rel (%p218) target = $region24
        $region23: #{tpu_custom_call.1} parent=19 // pred_region
          %s221 = sand.u32 %s21, 1
          %s222 = scalar_lea.sflag [#allocation7], %s221
          %s223 = sand.u32 %s64, 1
          %s224 = smul.addr %s223, 256
          %s225 = scalar_lea.vmem [#allocation6], %s224
          %s227 = ssub.s32 4096, 4096
          %228 = vsyncadd %s222, %s227
          %s229 = smul.addr %s28, 64
          %s230 = smul.addr %s229, 64
          %s231 = scalar_lea.hbm %s1, %s230
          %s232 = sshll.u32 %s225, 4
          %s233 = int_to_ptr.vmem [resolvable:$true] %s232
          %238 = dma.hbm_to_vmem [thread:$0]  %s231, 4096, %s233, %s222, 256, 256, 16
        $region24: #{tpu_custom_call.1} parent=19 // pred_fallthru
          _
        // Predicated region
        $region25: #{tpu_custom_call.1} parent=19 // pred_check
          %p239 = pneg %p102
        $region26: #{tpu_custom_call.1} parent=19 // pred_check_branch
          %241 = sbr.rel (%p239) target = $region28
        $region27: #{tpu_custom_call.1} parent=19 // pred_region
          %s242 = sand.u32 %s21, 1
          %s243 = scalar_lea.sflag [#allocation7], %s242
          %s244 = sand.u32 %s92, 1
          %s245 = smul.addr %s244, 1024
          %s246 = scalar_lea.vmem [#allocation8], %s245
          %s248 = ssub.s32 16384, 16384
          %249 = vsyncadd %s243, %s248
          %s250 = smul.addr %s29, 256
          %s251 = smul.addr %s28, 768
          %s252 = sadd.s32 %s250, %s251
          %s253 = smul.addr %s252, 64
          %s254 = scalar_lea.hbm %s2, %s253
          %s255 = sshll.u32 %s246, 4
          %s256 = int_to_ptr.vmem [resolvable:$true] %s255
          %261 = dma.hbm_to_vmem [thread:$0]  %s254, 16384, %s256, %s243, 256, 256, 16
        $region28: #{tpu_custom_call.1} parent=19 // pred_fallthru
          _
        // Predicated region
        $region29: #{tpu_custom_call.1} parent=19 // pred_check
          %p262 = pneg %p128
        $region30: #{tpu_custom_call.1} parent=19 // pred_check_branch
          %264 = sbr.rel (%p262) target = $region32
        $region31: #{tpu_custom_call.1} parent=19 // pred_region
          %s265 = sand.u32 %s21, 1
          %s266 = scalar_lea.sflag [#allocation10], %s265
          %s267 = sand.u32 %s118, 1
          %s268 = smul.addr %s267, 8
          %s269 = scalar_lea.vmem [#allocation9], %s268
          %s271 = ssub.s32 128, 128
          %272 = vsyncadd %s266, %s271
          %s273 = smul.addr %s28, 4
          %s274 = smul.addr %s273, 32
          %s275 = scalar_lea.hbm %s3, %s274
          %s277 = sshll.u32 %s269, 4
          %s278 = int_to_ptr.vmem [resolvable:$true] %s277
          %280 = dma.hbm_to_vmem [thread:$0]  %s275, 128, %s278, %s266
        $region32: #{tpu_custom_call.1} parent=19 // pred_fallthru
          _
        // Predicated region
        $region33: #{tpu_custom_call.1} parent=19 // pred_check
          %p281 = pneg %p156
        $region34: #{tpu_custom_call.1} parent=19 // pred_check_branch
          %283 = sbr.rel (%p281) target = $region36
        $region35: #{tpu_custom_call.1} parent=19 // pred_region
          %s284 = sand.u32 %s21, 1
          %s285 = scalar_lea.sflag [#allocation10], %s284
          %s286 = sand.u32 %s146, 1
          %s287 = smul.addr %s286, 8
          %s288 = scalar_lea.vmem [#allocation11], %s287
          %s290 = ssub.s32 128, 128
          %291 = vsyncadd %s285, %s290
          %s292 = smul.addr %s29, 4
          %s293 = smul.addr %s28, 12
          %s294 = sadd.s32 %s292, %s293
          %s295 = smul.addr %s294, 32
          %s296 = scalar_lea.hbm %s4, %s295
          %s298 = sshll.u32 %s288, 4
          %s299 = int_to_ptr.vmem [resolvable:$true] %s298
          %301 = dma.hbm_to_vmem [thread:$0]  %s296, 128, %s299, %s285
        $region36: #{tpu_custom_call.1} parent=19 // pred_fallthru
          _
      $region20: #{tpu_custom_call.1} parent=5 // pred_fallthru
        _
      %p302 = scmp.le.s32.totalorder 1, %s21
      %p303 = scmp.lt.s32.totalorder %s21, 7
      %p304 = pnand %p302, %p303
      %p305 = pneg %p304
      // Predicated region
      $region37: #{tpu_custom_call.1} parent=5 // pred_check
        _
      $region38: #{tpu_custom_call.1} parent=5 // pred_check_branch
        %307 = sbr.rel (%p304) target = $region40
      $region39: #{tpu_custom_call.1} parent=5 // pred_region
        %s308 = ssub.s32 %s21, 1
        // Predicated region
        $region41: #{tpu_custom_call.1} parent=39 // pred_check
          %p309 = pneg %p54
        $region42: #{tpu_custom_call.1} parent=39 // pred_check_branch
          %311 = sbr.rel (%p309) target = $region44
        $region43: #{tpu_custom_call.1} parent=39 // pred_region
          %312 = dma.done [#allocation4], 128
        $region44: #{tpu_custom_call.1} parent=39 // pred_fallthru
          _
        %s313 = sand.u32 %s26, 1
        %s314 = scalar_lea.sflag [#allocation7], %s313
        %s315 = sand.u32 %s67, 1
        %s316 = smul.addr %s315, 256
        %s317 = scalar_lea.vmem [#allocation6], %s316
        // Predicated region
        $region45: #{tpu_custom_call.1} parent=39 // pred_check
          %p318 = pneg %p80
        $region46: #{tpu_custom_call.1} parent=39 // pred_check_branch
          %320 = sbr.rel (%p318) target = $region48
        $region47: #{tpu_custom_call.1} parent=39 // pred_region
          %321 = dma.done %s314, 4096
        $region48: #{tpu_custom_call.1} parent=39 // pred_fallthru
          _
        %s322 = sand.u32 %s26, 1
        %s323 = scalar_lea.sflag [#allocation7], %s322
        %s324 = sand.u32 %s95, 1
        %s325 = smul.addr %s324, 1024
        %s326 = scalar_lea.vmem [#allocation8], %s325
        // Predicated region
        $region49: #{tpu_custom_call.1} parent=39 // pred_check
          %p327 = pneg %p108
        $region50: #{tpu_custom_call.1} parent=39 // pred_check_branch
          %329 = sbr.rel (%p327) target = $region52
        $region51: #{tpu_custom_call.1} parent=39 // pred_region
          %330 = dma.done %s323, 16384
        $region52: #{tpu_custom_call.1} parent=39 // pred_fallthru
          _
        %s331 = sand.u32 %s26, 1
        %s332 = scalar_lea.sflag [#allocation10], %s331
        %s333 = sand.u32 %s121, 1
        %s334 = smul.addr %s333, 8
        %s335 = scalar_lea.vmem [#allocation9], %s334
        // Predicated region
        $region53: #{tpu_custom_call.1} parent=39 // pred_check
          %p336 = pneg %p134
        $region54: #{tpu_custom_call.1} parent=39 // pred_check_branch
          %338 = sbr.rel (%p336) target = $region56
        $region55: #{tpu_custom_call.1} parent=39 // pred_region
          %339 = dma.done %s332, 128
        $region56: #{tpu_custom_call.1} parent=39 // pred_fallthru
          _
        %s340 = sand.u32 %s26, 1
        %s341 = scalar_lea.sflag [#allocation10], %s340
        %s342 = sand.u32 %s149, 1
        %s343 = smul.addr %s342, 8
        %s344 = scalar_lea.vmem [#allocation11], %s343
        // Predicated region
        $region57: #{tpu_custom_call.1} parent=39 // pred_check
          %p345 = pneg %p162
        $region58: #{tpu_custom_call.1} parent=39 // pred_check_branch
          %347 = sbr.rel (%p345) target = $region60
        $region59: #{tpu_custom_call.1} parent=39 // pred_region
          %348 = dma.done %s341, 128
        $region60: #{tpu_custom_call.1} parent=39 // pred_fallthru
          _
        %p349 = pneg %p54
        %p350 = pneg %p51
        %s351 = sand.u32 %s26, 1
        %s352 = scalar_lea.sflag [#allocation7], %s351
        %s353 = sand.u32 %s67, 1
        %s354 = smul.addr %s353, 256
        %s355 = scalar_lea.vmem [#allocation6], %s354
        %p356 = pneg %p80
        %p357 = pneg %p77
        %s358 = sand.u32 %s26, 1
        %s359 = scalar_lea.sflag [#allocation7], %s358
        %s360 = sand.u32 %s95, 1
        %s361 = smul.addr %s360, 1024
        %s362 = scalar_lea.vmem [#allocation8], %s361
        %p363 = pneg %p108
        %p364 = pneg %p105
        %s365 = sand.u32 %s26, 1
        %s366 = scalar_lea.sflag [#allocation10], %s365
        %s367 = sand.u32 %s121, 1
        %s368 = smul.addr %s367, 8
        %s369 = scalar_lea.vmem [#allocation9], %s368
        %p370 = pneg %p134
        %p371 = pneg %p131
        %s372 = sand.u32 %s26, 1
        %s373 = scalar_lea.sflag [#allocation10], %s372
        %s374 = sand.u32 %s149, 1
        %s375 = smul.addr %s374, 8
        %s376 = scalar_lea.vmem [#allocation11], %s375
        %p377 = pneg %p162
        %p378 = pneg %p159
        %p379 = pneg %p188
        %p380 = pneg %p185
        %s381 = sand.u32 %s175, 1
        %s382 = scalar_lea.sflag [#allocation5], %s381
        %s383 = sand.u32 %s175, 1
        %s384 = smul.addr %s383, 32
        %s385 = scalar_lea.vmem [#allocation12], %s384
        %p387 = scmp.eq.s32.totalorder %s31, 0
        // Predicated region
        $region61: #{tpu_custom_call.1} parent=39 // pred_check
          %p388 = pneg %p387
        $region62: #{tpu_custom_call.1} parent=39 // pred_check_branch
          %390 = sbr.rel (%p388) target = $region64
        $region63: #{tpu_custom_call.1} parent=39 // pred_region
          %v391 = vld [vmem:[#allocation3] sm:$0xff]
          %v392 = vpack.c.bf16 %v391, %v391
          %v393 = vld [vmem:[%s317] sm:$0xff]
          %v394 = vld [vmem:[%s317 + $0x8] sm:$0xff]
          %v395 = vld [vmem:[%s317 + $0x10] sm:$0xff]
          %v396 = vld [vmem:[%s317 + $0x18] sm:$0xff]
          %v397 = vld [vmem:[%s317 + $0x20] sm:$0xff]
          %v398 = vld [vmem:[%s317 + $0x28] sm:$0xff]
          %v399 = vld [vmem:[%s317 + $0x30] sm:$0xff]
          %v400 = vld [vmem:[%s317 + $0x38] sm:$0xff]
          %v401 = vld [vmem:[%s317 + $0x40] sm:$0xff]
          %v402 = vld [vmem:[%s317 + $0x48] sm:$0xff]
          %v403 = vld [vmem:[%s317 + $0x50] sm:$0xff]
          %v404 = vld [vmem:[%s317 + $0x58] sm:$0xff]
          %v405 = vld [vmem:[%s317 + $0x60] sm:$0xff]
          %v406 = vld [vmem:[%s317 + $0x68] sm:$0xff]
          %v407 = vld [vmem:[%s317 + $0x70] sm:$0xff]
          %v408 = vld [vmem:[%s317 + $0x78] sm:$0xff]
          %v409 = vld [vmem:[%s317 + $0x80] sm:$0xff]
          %v410 = vld [vmem:[%s317 + $0x88] sm:$0xff]
          %v411 = vld [vmem:[%s317 + $0x90] sm:$0xff]
          %v412 = vld [vmem:[%s317 + $0x98] sm:$0xff]
          %v413 = vld [vmem:[%s317 + $0xa0] sm:$0xff]
          %v414 = vld [vmem:[%s317 + $0xa8] sm:$0xff]
          %v415 = vld [vmem:[%s317 + $0xb0] sm:$0xff]
          %v416 = vld [vmem:[%s317 + $0xb8] sm:$0xff]
          %v417 = vld [vmem:[%s317 + $0xc0] sm:$0xff]
          %v418 = vld [vmem:[%s317 + $0xc8] sm:$0xff]
          %v419 = vld [vmem:[%s317 + $0xd0] sm:$0xff]
          %v420 = vld [vmem:[%s317 + $0xd8] sm:$0xff]
          %v421 = vld [vmem:[%s317 + $0xe0] sm:$0xff]
          %v422 = vld [vmem:[%s317 + $0xe8] sm:$0xff]
          %v423 = vld [vmem:[%s317 + $0xf0] sm:$0xff]
          %v424 = vld [vmem:[%s317 + $0xf8] sm:$0xff]
          %v457 = vunpack.c.l.b16 %v393
          %v458 = vunpack.c.h.b16 %v393
          %v459 = vunpack.c.l.b16 %v394
          %v460 = vunpack.c.h.b16 %v394
          %v461 = vunpack.c.l.b16 %v395
          %v462 = vunpack.c.h.b16 %v395
          %v463 = vunpack.c.l.b16 %v396
          %v464 = vunpack.c.h.b16 %v396
          %v465 = vunpack.c.l.b16 %v397
          %v466 = vunpack.c.h.b16 %v397
          %v467 = vunpack.c.l.b16 %v398
          %v468 = vunpack.c.h.b16 %v398
          %v469 = vunpack.c.l.b16 %v399
          %v470 = vunpack.c.h.b16 %v399
          %v471 = vunpack.c.l.b16 %v400
          %v472 = vunpack.c.h.b16 %v400
          %v473 = vunpack.c.l.b16 %v401
          %v474 = vunpack.c.h.b16 %v401
          %v475 = vunpack.c.l.b16 %v402
          %v476 = vunpack.c.h.b16 %v402
          %v477 = vunpack.c.l.b16 %v403
          %v478 = vunpack.c.h.b16 %v403
          %v479 = vunpack.c.l.b16 %v404
          %v480 = vunpack.c.h.b16 %v404
          %v481 = vunpack.c.l.b16 %v405
          %v482 = vunpack.c.h.b16 %v405
          %v483 = vunpack.c.l.b16 %v406
          %v484 = vunpack.c.h.b16 %v406
          %v485 = vunpack.c.l.b16 %v407
          %v486 = vunpack.c.h.b16 %v407
          %v487 = vunpack.c.l.b16 %v408
          %v488 = vunpack.c.h.b16 %v408
          %v489 = vunpack.c.l.b16 %v409
          %v490 = vunpack.c.h.b16 %v409
          %v491 = vunpack.c.l.b16 %v410
          %v492 = vunpack.c.h.b16 %v410
          %v493 = vunpack.c.l.b16 %v411
          %v494 = vunpack.c.h.b16 %v411
          %v495 = vunpack.c.l.b16 %v412
          %v496 = vunpack.c.h.b16 %v412
          %v497 = vunpack.c.l.b16 %v413
          %v498 = vunpack.c.h.b16 %v413
          %v499 = vunpack.c.l.b16 %v414
          %v500 = vunpack.c.h.b16 %v414
          %v501 = vunpack.c.l.b16 %v415
          %v502 = vunpack.c.h.b16 %v415
          %v503 = vunpack.c.l.b16 %v416
          %v504 = vunpack.c.h.b16 %v416
          %v505 = vunpack.c.l.b16 %v417
          %v506 = vunpack.c.h.b16 %v417
          %v507 = vunpack.c.l.b16 %v418
          %v508 = vunpack.c.h.b16 %v418
          %v509 = vunpack.c.l.b16 %v419
          %v510 = vunpack.c.h.b16 %v419
          %v511 = vunpack.c.l.b16 %v420
          %v512 = vunpack.c.h.b16 %v420
          %v513 = vunpack.c.l.b16 %v421
          %v514 = vunpack.c.h.b16 %v421
          %v515 = vunpack.c.l.b16 %v422
          %v516 = vunpack.c.h.b16 %v422
          %v517 = vunpack.c.l.b16 %v423
          %v518 = vunpack.c.h.b16 %v423
          %v519 = vunpack.c.l.b16 %v424
          %v520 = vunpack.c.h.b16 %v424
          %v521 = vpack.c.b16 %v461, %v457
          %v522 = vpack.c.b16 %v462, %v458
          %v523 = vpack.c.b16 %v463, %v459
          %v524 = vpack.c.b16 %v464, %v460
          %v525 = vpack.c.b16 %v469, %v465
          %v526 = vpack.c.b16 %v470, %v466
          %v527 = vpack.c.b16 %v471, %v467
          %v528 = vpack.c.b16 %v472, %v468
          %v529 = vpack.c.b16 %v477, %v473
          %v530 = vpack.c.b16 %v478, %v474
          %v531 = vpack.c.b16 %v479, %v475
          %v532 = vpack.c.b16 %v480, %v476
          %v533 = vpack.c.b16 %v485, %v481
          %v534 = vpack.c.b16 %v486, %v482
          %v535 = vpack.c.b16 %v487, %v483
          %v536 = vpack.c.b16 %v488, %v484
          %v537 = vpack.c.b16 %v493, %v489
          %v538 = vpack.c.b16 %v494, %v490
          %v539 = vpack.c.b16 %v495, %v491
          %v540 = vpack.c.b16 %v496, %v492
          %v541 = vpack.c.b16 %v501, %v497
          %v542 = vpack.c.b16 %v502, %v498
          %v543 = vpack.c.b16 %v503, %v499
          %v544 = vpack.c.b16 %v504, %v500
          %v545 = vpack.c.b16 %v509, %v505
          %v546 = vpack.c.b16 %v510, %v506
          %v547 = vpack.c.b16 %v511, %v507
          %v548 = vpack.c.b16 %v512, %v508
          %v549 = vpack.c.b16 %v517, %v513
          %v550 = vpack.c.b16 %v518, %v514
          %v551 = vpack.c.b16 %v519, %v515
          %v552 = vpack.c.b16 %v520, %v516
          %585 = vmatprep.subr.bf16.mxu0 %v550
          %586 = vmatpush1.bf16.msra.mxu0 %v549
          %587 = vmatprep.subr.bf16.mxu0 %v546
          %588 = vmatpush1.bf16.msra.mxu0 %v545
          %589 = vmatprep.subr.bf16.mxu0 %v542
          %590 = vmatpush1.bf16.msra.mxu0 %v541
          %591 = vmatprep.subr.bf16.mxu0 %v538
          %592 = vmatpush1.bf16.msra.mxu0 %v537
          %593 = vmatprep.subr.bf16.mxu0 %v534
          %594 = vmatpush1.bf16.msra.mxu0 %v533
          %595 = vmatprep.subr.bf16.mxu0 %v530
          %596 = vmatpush1.bf16.msra.mxu0 %v529
          %597 = vmatprep.subr.bf16.mxu0 %v526
          %598 = vmatpush1.bf16.msra.mxu0 %v525
          %599 = vmatprep.subr.bf16.mxu0 %v522
          %600 = vmatpush1.bf16.msra.mxu0 %v521
          %601 = vmatprep.subr.bf16.mxu0 0
          %602 = vmatpush2.bf16.msra.mxu0 0
          %603 = vmatprep.subr.bf16.mxu0 0
          %604 = vmatpush2.bf16.msra.mxu0 0
          %605 = vmatprep.subr.bf16.mxu0 0
          %606 = vmatpush2.bf16.msra.mxu0 0
          %607 = vmatprep.subr.bf16.mxu0 0
          %608 = vmatpush2.bf16.msra.mxu0 0
          %609 = vmatprep.subr.bf16.mxu0 0
          %610 = vmatpush2.bf16.msra.mxu0 0
          %611 = vmatprep.subr.bf16.mxu0 0
          %612 = vmatpush2.bf16.msra.mxu0 0
          %613 = vmatprep.subr.bf16.mxu0 0
          %614 = vmatpush2.bf16.msra.mxu0 0
          %615 = vmatprep.subr.bf16.mxu0 0
          %616 = vmatpush2.bf16.msra.mxu0 0
          %617 = vmatprep.mubr.bf16.mxu0 0
          %618 = vmatmul.mubr.bf16.gmra.mxu0 %v392
          %v619 = vpop.f32.mrf.mxu0
          %v620 = vadd.f32 0.0, %v619
          %v621 = vpop.f32.mrf.mxu0
          %v622 = vadd.f32 0.0, %v621
          %v623 = vpop.f32.mrf.mxu0
          %v624 = vpop.f32.mrf.mxu0
          %625 = vdwg.mxu0
          %626 = vmatprep.subr.bf16.mxu0 %v552
          %627 = vmatpush1.bf16.msra.mxu0 %v551
          %628 = vmatprep.subr.bf16.mxu0 %v548
          %629 = vmatpush1.bf16.msra.mxu0 %v547
          %630 = vmatprep.subr.bf16.mxu0 %v544
          %631 = vmatpush1.bf16.msra.mxu0 %v543
          %632 = vmatprep.subr.bf16.mxu0 %v540
          %633 = vmatpush1.bf16.msra.mxu0 %v539
          %634 = vmatprep.subr.bf16.mxu0 %v536
          %635 = vmatpush1.bf16.msra.mxu0 %v535
          %636 = vmatprep.subr.bf16.mxu0 %v532
          %637 = vmatpush1.bf16.msra.mxu0 %v531
          %638 = vmatprep.subr.bf16.mxu0 %v528
          %639 = vmatpush1.bf16.msra.mxu0 %v527
          %640 = vmatprep.subr.bf16.mxu0 %v524
          %641 = vmatpush1.bf16.msra.mxu0 %v523
          %642 = vmatprep.subr.bf16.mxu0 0
          %643 = vmatpush2.bf16.msra.mxu0 0
          %644 = vmatprep.subr.bf16.mxu0 0
          %645 = vmatpush2.bf16.msra.mxu0 0
          %646 = vmatprep.subr.bf16.mxu0 0
          %647 = vmatpush2.bf16.msra.mxu0 0
          %648 = vmatprep.subr.bf16.mxu0 0
          %649 = vmatpush2.bf16.msra.mxu0 0
          %650 = vmatprep.subr.bf16.mxu0 0
          %651 = vmatpush2.bf16.msra.mxu0 0
          %652 = vmatprep.subr.bf16.mxu0 0
          %653 = vmatpush2.bf16.msra.mxu0 0
          %654 = vmatprep.subr.bf16.mxu0 0
          %655 = vmatpush2.bf16.msra.mxu0 0
          %656 = vmatprep.subr.bf16.mxu0 0
          %657 = vmatpush2.bf16.msra.mxu0 0
          %658 = vmatprep.mubr.bf16.mxu0 0
          %659 = vmatmul.mubr.bf16.gmra.mxu0 %v392
          %v660 = vpop.f32.mrf.mxu0
          %v661 = vadd.f32 0.0, %v660
          %v662 = vpop.f32.mrf.mxu0
          %v663 = vadd.f32 0.0, %v662
          %v664 = vpop.f32.mrf.mxu0
          %v665 = vpop.f32.mrf.mxu0
          %666 = vdwg.mxu0
          %v667 = vld [vmem:[%s335] sm:$0xff]
          %v668 = vrot.slane %v620, 4
          %v669 = vadd.f32 %v620, %v668
          %v670 = vrot.slane %v669, 2
          %v671 = vadd.f32 %v669, %v670
          %v672 = vrot.slane %v671, 1
          %v673 = vadd.f32 %v671, %v672
          %v674 = vrot.slane %v622, 4
          %v675 = vadd.f32 %v622, %v674
          %v676 = vrot.slane %v675, 2
          %v677 = vadd.f32 %v675, %v676
          %v678 = vrot.slane %v677, 1
          %v679 = vadd.f32 %v677, %v678
          %v680 = vrot.slane %v661, 4
          %v681 = vadd.f32 %v661, %v680
          %v682 = vrot.slane %v681, 2
          %v683 = vadd.f32 %v681, %v682
          %v684 = vrot.slane %v683, 1
          %v685 = vadd.f32 %v683, %v684
          %v686 = vrot.slane %v663, 4
          %v687 = vadd.f32 %v663, %v686
          %v688 = vrot.slane %v687, 2
          %v689 = vadd.f32 %v687, %v688
          %v690 = vrot.slane %v689, 1
          %v691 = vadd.f32 %v689, %v690
          %v692 = vrcp.pop 8.0
          %v693 = vmul.f32 %v673, %v692
          %v694 = vmul.f32 %v679, %v692
          %v695 = vmul.f32 %v685, %v692
          %v696 = vmul.f32 %v691, %v692
          %v697 = vmul.f32 %v620, %v620
          %v698 = vmul.f32 %v622, %v622
          %v699 = vmul.f32 %v661, %v661
          %v700 = vmul.f32 %v663, %v663
          %v701 = vrot.slane %v697, 4
          %v702 = vadd.f32 %v697, %v701
          %v703 = vrot.slane %v702, 2
          %v704 = vadd.f32 %v702, %v703
          %v705 = vrot.slane %v704, 1
          %v706 = vadd.f32 %v704, %v705
          %v707 = vrot.slane %v698, 4
          %v708 = vadd.f32 %v698, %v707
          %v709 = vrot.slane %v708, 2
          %v710 = vadd.f32 %v708, %v709
          %v711 = vrot.slane %v710, 1
          %v712 = vadd.f32 %v710, %v711
          %v713 = vrot.slane %v699, 4
          %v714 = vadd.f32 %v699, %v713
          %v715 = vrot.slane %v714, 2
          %v716 = vadd.f32 %v714, %v715
          %v717 = vrot.slane %v716, 1
          %v718 = vadd.f32 %v716, %v717
          %v719 = vrot.slane %v700, 4
          %v720 = vadd.f32 %v700, %v719
          %v721 = vrot.slane %v720, 2
          %v722 = vadd.f32 %v720, %v721
          %v723 = vrot.slane %v722, 1
          %v724 = vadd.f32 %v722, %v723
          %v725 = vmul.f32 %v706, %v692
          %v726 = vmul.f32 %v712, %v692
          %v727 = vmul.f32 %v718, %v692
          %v728 = vmul.f32 %v724, %v692
          %v729 = vmul.f32 %v693, %v693
          %v730 = vmul.f32 %v694, %v694
          %v731 = vmul.f32 %v695, %v695
          %v732 = vmul.f32 %v696, %v696
          %v733 = vsub.f32 %v725, %v729
          %v734 = vsub.f32 %v726, %v730
          %v735 = vsub.f32 %v727, %v731
          %v736 = vsub.f32 %v728, %v732
          %v737 = vmax.f32 %v733, 0.0
          %v738 = vmax.f32 %v734, 0.0
          %v739 = vmax.f32 %v735, 0.0
          %v740 = vmax.f32 %v736, 0.0
          %v741 = vadd.f32 %v737, 1e-05
          %v742 = vadd.f32 %v738, 1e-05
          %v743 = vadd.f32 %v739, 1e-05
          %v744 = vadd.f32 %v740, 1e-05
          %v745 = vrsqrt.pop %v741
          %v746 = vrsqrt.pop %v742
          %v747 = vrsqrt.pop %v743
          %v748 = vrsqrt.pop %v744
          %v753 = vcombine.low %v745, %v746
          %v754 = vcombine.low %v747, %v748
          %v756 = vunpack.c.l.s4 1983009808
          %v757 = vunpack.c.0.s8 %v756
          %v758 = vlaneseq
          %v759 = vshrl.u32 %v758, 7
          %v760 = vsub.s32 %v757, %v759
          %v761 = vrot.slane %v753, %v760
          %v763 = vunpack.c.l.s4 1983009808
          %v764 = vunpack.c.0.s8 %v763
          %v765 = vlaneseq
          %v766 = vshrl.u32 %v765, 7
          %v767 = vsub.s32 %v764, %v766
          %v768 = vrot.slane %v754, %v767
          %v769 = vcombine.low %v761, %v768
          %v771 = vmul.f32 %v667, %v769
          %v773 = vlaneseq
          %v774 = vshrl.u32 %v773, 7
          %v775 = vsub.s32 0, %v774
          %v776 = vrot.slane %v771, %v775
          %v777 = vlaneseq
          %v778 = vshrl.u32 %v777, 7
          %v779 = vsub.s32 2, %v778
          %v780 = vrot.slane %v771, %v779
          %v781 = vlaneseq
          %v782 = vshrl.u32 %v781, 7
          %v783 = vsub.s32 4, %v782
          %v784 = vrot.slane %v771, %v783
          %v785 = vlaneseq
          %v786 = vshrl.u32 %v785, 7
          %v787 = vsub.s32 6, %v786
          %v788 = vrot.slane %v771, %v787
          %v793 = vmul.f32 %v693, %v776
          %v794 = vmul.f32 %v694, %v780
          %v795 = vmul.f32 %v695, %v784
          %v796 = vmul.f32 %v696, %v788
          %v801 = vcombine.low %v793, %v794
          %v802 = vcombine.low %v795, %v796
          %v804 = vunpack.c.l.s4 1983009808
          %v805 = vunpack.c.0.s8 %v804
          %v806 = vlaneseq
          %v807 = vshrl.u32 %v806, 7
          %v808 = vsub.s32 %v805, %v807
          %v809 = vrot.slane %v801, %v808
          %v811 = vunpack.c.l.s4 1983009808
          %v812 = vunpack.c.0.s8 %v811
          %v813 = vlaneseq
          %v814 = vshrl.u32 %v813, 7
          %v815 = vsub.s32 %v812, %v814
          %v816 = vrot.slane %v802, %v815
          %v817 = vcombine.low %v809, %v816
          %v818 = vrot.slane %v817, 7
          %v820 = vsub.f32 %v667, %v818
          %v821 = vlaneseq
          %v822 = vshrl.u32 %v821, 7
          %v823 = vsub.s32 0, %v822
          %v824 = vrot.slane %v776, %v823
          %v825 = vlaneseq
          %v826 = vshrl.u32 %v825, 7
          %v827 = vsub.s32 0, %v826
          %v828 = vrot.slane %v780, %v827
          %v829 = vlaneseq
          %v830 = vshrl.u32 %v829, 7
          %v831 = vsub.s32 0, %v830
          %v832 = vrot.slane %v784, %v831
          %v833 = vlaneseq
          %v834 = vshrl.u32 %v833, 7
          %v835 = vsub.s32 0, %v834
          %v836 = vrot.slane %v788, %v835
          %v837 = vmul.f32 %v620, %v824
          %v838 = vmul.f32 %v622, %v828
          %v839 = vmul.f32 %v661, %v832
          %v840 = vmul.f32 %v663, %v836
          %v842 = vlaneseq
          %v843 = vshrl.u32 %v842, 7
          %v844 = vsub.s32 1, %v843
          %v845 = vrot.slane %v820, %v844
          %v846 = vlaneseq
          %v847 = vshrl.u32 %v846, 7
          %v848 = vsub.s32 3, %v847
          %v849 = vrot.slane %v820, %v848
          %v850 = vlaneseq
          %v851 = vshrl.u32 %v850, 7
          %v852 = vsub.s32 5, %v851
          %v853 = vrot.slane %v820, %v852
          %v854 = vlaneseq
          %v855 = vshrl.u32 %v854, 7
          %v856 = vsub.s32 7, %v855
          %v857 = vrot.slane %v820, %v856
          %v862 = vlaneseq
          %v863 = vshrl.u32 %v862, 7
          %v864 = vsub.s32 1, %v863
          %v865 = vrot.slane %v845, %v864
          %v866 = vlaneseq
          %v867 = vshrl.u32 %v866, 7
          %v868 = vsub.s32 1, %v867
          %v869 = vrot.slane %v849, %v868
          %v870 = vlaneseq
          %v871 = vshrl.u32 %v870, 7
          %v872 = vsub.s32 1, %v871
          %v873 = vrot.slane %v853, %v872
          %v874 = vlaneseq
          %v875 = vshrl.u32 %v874, 7
          %v876 = vsub.s32 1, %v875
          %v877 = vrot.slane %v857, %v876
          %v878 = vadd.f32 %v837, %v865
          %v879 = vadd.f32 %v838, %v869
          %v880 = vadd.f32 %v839, %v873
          %v881 = vadd.f32 %v840, %v877
          %882 = vst [vmem:[#allocation2] sm:$0xff] %v878
          %883 = vst [vmem:[#allocation2 + $0x8] sm:$0xff] %v879
          %884 = vst [vmem:[#allocation2 + $0x10] sm:$0xff] %v880
          %885 = vst [vmem:[#allocation2 + $0x18] sm:$0xff] %v881
        $region64: #{tpu_custom_call.1} parent=39 // pred_fallthru
          _
        %v886 = vld [vmem:[#allocation2] sm:$0xff]
        %v887 = vld [vmem:[#allocation2 + $0x8] sm:$0xff]
        %v888 = vld [vmem:[#allocation2 + $0x10] sm:$0xff]
        %v889 = vld [vmem:[#allocation2 + $0x18] sm:$0xff]
        %v890 = vmax.f32 %v886, 0.0
        %v891 = vmax.f32 %v887, 0.0
        %v892 = vmax.f32 %v888, 0.0
        %v893 = vmax.f32 %v889, 0.0
        %v894 = vpack.c.bf16 %v890, %v890
        %v895 = vpack.c.bf16 %v891, %v891
        %v896 = vpack.c.bf16 %v892, %v892
        %v897 = vpack.c.bf16 %v893, %v893
        %v898 = vld [vmem:[%s326] sm:$0xff]
        %v899 = vld [vmem:[%s326 + $0x8] sm:$0xff]
        %v900 = vld [vmem:[%s326 + $0x10] sm:$0xff]
        %v901 = vld [vmem:[%s326 + $0x18] sm:$0xff]
        %v902 = vld [vmem:[%s326 + $0x20] sm:$0xff]
        %v903 = vld [vmem:[%s326 + $0x28] sm:$0xff]
        %v904 = vld [vmem:[%s326 + $0x30] sm:$0xff]
        %v905 = vld [vmem:[%s326 + $0x38] sm:$0xff]
        %v906 = vld [vmem:[%s326 + $0x40] sm:$0xff]
        %v907 = vld [vmem:[%s326 + $0x48] sm:$0xff]
        %v908 = vld [vmem:[%s326 + $0x50] sm:$0xff]
        %v909 = vld [vmem:[%s326 + $0x58] sm:$0xff]
        %v910 = vld [vmem:[%s326 + $0x60] sm:$0xff]
        %v911 = vld [vmem:[%s326 + $0x68] sm:$0xff]
        %v912 = vld [vmem:[%s326 + $0x70] sm:$0xff]
        %v913 = vld [vmem:[%s326 + $0x78] sm:$0xff]
        %v914 = vld [vmem:[%s326 + $0x80] sm:$0xff]
        %v915 = vld [vmem:[%s326 + $0x88] sm:$0xff]
        %v916 = vld [vmem:[%s326 + $0x90] sm:$0xff]
        %v917 = vld [vmem:[%s326 + $0x98] sm:$0xff]
        %v918 = vld [vmem:[%s326 + $0xa0] sm:$0xff]
        %v919 = vld [vmem:[%s326 + $0xa8] sm:$0xff]
        %v920 = vld [vmem:[%s326 + $0xb0] sm:$0xff]
        %v921 = vld [vmem:[%s326 + $0xb8] sm:$0xff]
        %v922 = vld [vmem:[%s326 + $0xc0] sm:$0xff]
        %v923 = vld [vmem:[%s326 + $0xc8] sm:$0xff]
        %v924 = vld [vmem:[%s326 + $0xd0] sm:$0xff]
        %v925 = vld [vmem:[%s326 + $0xd8] sm:$0xff]
        %v926 = vld [vmem:[%s326 + $0xe0] sm:$0xff]
        %v927 = vld [vmem:[%s326 + $0xe8] sm:$0xff]
        %v928 = vld [vmem:[%s326 + $0xf0] sm:$0xff]
        %v929 = vld [vmem:[%s326 + $0xf8] sm:$0xff]
        %v930 = vld [vmem:[%s326 + $0x100] sm:$0xff]
        %v931 = vld [vmem:[%s326 + $0x108] sm:$0xff]
        %v932 = vld [vmem:[%s326 + $0x110] sm:$0xff]
        %v933 = vld [vmem:[%s326 + $0x118] sm:$0xff]
        %v934 = vld [vmem:[%s326 + $0x120] sm:$0xff]
        %v935 = vld [vmem:[%s326 + $0x128] sm:$0xff]
        %v936 = vld [vmem:[%s326 + $0x130] sm:$0xff]
        %v937 = vld [vmem:[%s326 + $0x138] sm:$0xff]
        %v938 = vld [vmem:[%s326 + $0x140] sm:$0xff]
        %v939 = vld [vmem:[%s326 + $0x148] sm:$0xff]
        %v940 = vld [vmem:[%s326 + $0x150] sm:$0xff]
        %v941 = vld [vmem:[%s326 + $0x158] sm:$0xff]
        %v942 = vld [vmem:[%s326 + $0x160] sm:$0xff]
        %v943 = vld [vmem:[%s326 + $0x168] sm:$0xff]
        %v944 = vld [vmem:[%s326 + $0x170] sm:$0xff]
        %v945 = vld [vmem:[%s326 + $0x178] sm:$0xff]
        %v946 = vld [vmem:[%s326 + $0x180] sm:$0xff]
        %v947 = vld [vmem:[%s326 + $0x188] sm:$0xff]
        %v948 = vld [vmem:[%s326 + $0x190] sm:$0xff]
        %v949 = vld [vmem:[%s326 + $0x198] sm:$0xff]
        %v950 = vld [vmem:[%s326 + $0x1a0] sm:$0xff]
        %v951 = vld [vmem:[%s326 + $0x1a8] sm:$0xff]
        %v952 = vld [vmem:[%s326 + $0x1b0] sm:$0xff]
        %v953 = vld [vmem:[%s326 + $0x1b8] sm:$0xff]
        %v954 = vld [vmem:[%s326 + $0x1c0] sm:$0xff]
        %v955 = vld [vmem:[%s326 + $0x1c8] sm:$0xff]
        %v956 = vld [vmem:[%s326 + $0x1d0] sm:$0xff]
        %v957 = vld [vmem:[%s326 + $0x1d8] sm:$0xff]
        %v958 = vld [vmem:[%s326 + $0x1e0] sm:$0xff]
        %v959 = vld [vmem:[%s326 + $0x1e8] sm:$0xff]
        %v960 = vld [vmem:[%s326 + $0x1f0] sm:$0xff]
        %v961 = vld [vmem:[%s326 + $0x1f8] sm:$0xff]
        %v962 = vld [vmem:[%s326 + $0x200] sm:$0xff]
        %v963 = vld [vmem:[%s326 + $0x208] sm:$0xff]
        %v964 = vld [vmem:[%s326 + $0x210] sm:$0xff]
        %v965 = vld [vmem:[%s326 + $0x218] sm:$0xff]
        %v966 = vld [vmem:[%s326 + $0x220] sm:$0xff]
        %v967 = vld [vmem:[%s326 + $0x228] sm:$0xff]
        %v968 = vld [vmem:[%s326 + $0x230] sm:$0xff]
        %v969 = vld [vmem:[%s326 + $0x238] sm:$0xff]
        %v970 = vld [vmem:[%s326 + $0x240] sm:$0xff]
        %v971 = vld [vmem:[%s326 + $0x248] sm:$0xff]
        %v972 = vld [vmem:[%s326 + $0x250] sm:$0xff]
        %v973 = vld [vmem:[%s326 + $0x258] sm:$0xff]
        %v974 = vld [vmem:[%s326 + $0x260] sm:$0xff]
        %v975 = vld [vmem:[%s326 + $0x268] sm:$0xff]
        %v976 = vld [vmem:[%s326 + $0x270] sm:$0xff]
        %v977 = vld [vmem:[%s326 + $0x278] sm:$0xff]
        %v978 = vld [vmem:[%s326 + $0x280] sm:$0xff]
        %v979 = vld [vmem:[%s326 + $0x288] sm:$0xff]
        %v980 = vld [vmem:[%s326 + $0x290] sm:$0xff]
        %v981 = vld [vmem:[%s326 + $0x298] sm:$0xff]
        %v982 = vld [vmem:[%s326 + $0x2a0] sm:$0xff]
        %v983 = vld [vmem:[%s326 + $0x2a8] sm:$0xff]
        %v984 = vld [vmem:[%s326 + $0x2b0] sm:$0xff]
        %v985 = vld [vmem:[%s326 + $0x2b8] sm:$0xff]
        %v986 = vld [vmem:[%s326 + $0x2c0] sm:$0xff]
        %v987 = vld [vmem:[%s326 + $0x2c8] sm:$0xff]
        %v988 = vld [vmem:[%s326 + $0x2d0] sm:$0xff]
        %v989 = vld [vmem:[%s326 + $0x2d8] sm:$0xff]
        %v990 = vld [vmem:[%s326 + $0x2e0] sm:$0xff]
        %v991 = vld [vmem:[%s326 + $0x2e8] sm:$0xff]
        %v992 = vld [vmem:[%s326 + $0x2f0] sm:$0xff]
        %v993 = vld [vmem:[%s326 + $0x2f8] sm:$0xff]
        %v994 = vld [vmem:[%s326 + $0x300] sm:$0xff]
        %v995 = vld [vmem:[%s326 + $0x308] sm:$0xff]
        %v996 = vld [vmem:[%s326 + $0x310] sm:$0xff]
        %v997 = vld [vmem:[%s326 + $0x318] sm:$0xff]
        %v998 = vld [vmem:[%s326 + $0x320] sm:$0xff]
        %v999 = vld [vmem:[%s326 + $0x328] sm:$0xff]
        %v1000 = vld [vmem:[%s326 + $0x330] sm:$0xff]
        %v1001 = vld [vmem:[%s326 + $0x338] sm:$0xff]
        %v1002 = vld [vmem:[%s326 + $0x340] sm:$0xff]
        %v1003 = vld [vmem:[%s326 + $0x348] sm:$0xff]
        %v1004 = vld [vmem:[%s326 + $0x350] sm:$0xff]
        %v1005 = vld [vmem:[%s326 + $0x358] sm:$0xff]
        %v1006 = vld [vmem:[%s326 + $0x360] sm:$0xff]
        %v1007 = vld [vmem:[%s326 + $0x368] sm:$0xff]
        %v1008 = vld [vmem:[%s326 + $0x370] sm:$0xff]
        %v1009 = vld [vmem:[%s326 + $0x378] sm:$0xff]
        %v1010 = vld [vmem:[%s326 + $0x380] sm:$0xff]
        %v1011 = vld [vmem:[%s326 + $0x388] sm:$0xff]
        %v1012 = vld [vmem:[%s326 + $0x390] sm:$0xff]
        %v1013 = vld [vmem:[%s326 + $0x398] sm:$0xff]
        %v1014 = vld [vmem:[%s326 + $0x3a0] sm:$0xff]
        %v1015 = vld [vmem:[%s326 + $0x3a8] sm:$0xff]
        %v1016 = vld [vmem:[%s326 + $0x3b0] sm:$0xff]
        %v1017 = vld [vmem:[%s326 + $0x3b8] sm:$0xff]
        %v1018 = vld [vmem:[%s326 + $0x3c0] sm:$0xff]
        %v1019 = vld [vmem:[%s326 + $0x3c8] sm:$0xff]
        %v1020 = vld [vmem:[%s326 + $0x3d0] sm:$0xff]
        %v1021 = vld [vmem:[%s326 + $0x3d8] sm:$0xff]
        %v1022 = vld [vmem:[%s326 + $0x3e0] sm:$0xff]
        %v1023 = vld [vmem:[%s326 + $0x3e8] sm:$0xff]
        %v1024 = vld [vmem:[%s326 + $0x3f0] sm:$0xff]
        %v1025 = vld [vmem:[%s326 + $0x3f8] sm:$0xff]
        %v1154 = vunpack.c.l.b16 %v898
        %v1155 = vunpack.c.h.b16 %v898
        %v1156 = vunpack.c.l.b16 %v899
        %v1157 = vunpack.c.h.b16 %v899
        %v1158 = vunpack.c.l.b16 %v900
        %v1159 = vunpack.c.h.b16 %v900
        %v1160 = vunpack.c.l.b16 %v901
        %v1161 = vunpack.c.h.b16 %v901
        %v1162 = vunpack.c.l.b16 %v902
        %v1163 = vunpack.c.h.b16 %v902
        %v1164 = vunpack.c.l.b16 %v903
        %v1165 = vunpack.c.h.b16 %v903
        %v1166 = vunpack.c.l.b16 %v904
        %v1167 = vunpack.c.h.b16 %v904
        %v1168 = vunpack.c.l.b16 %v905
        %v1169 = vunpack.c.h.b16 %v905
        %v1170 = vunpack.c.l.b16 %v906
        %v1171 = vunpack.c.h.b16 %v906
        %v1172 = vunpack.c.l.b16 %v907
        %v1173 = vunpack.c.h.b16 %v907
        %v1174 = vunpack.c.l.b16 %v908
        %v1175 = vunpack.c.h.b16 %v908
        %v1176 = vunpack.c.l.b16 %v909
        %v1177 = vunpack.c.h.b16 %v909
        %v1178 = vunpack.c.l.b16 %v910
        %v1179 = vunpack.c.h.b16 %v910
        %v1180 = vunpack.c.l.b16 %v911
        %v1181 = vunpack.c.h.b16 %v911
        %v1182 = vunpack.c.l.b16 %v912
        %v1183 = vunpack.c.h.b16 %v912
        %v1184 = vunpack.c.l.b16 %v913
        %v1185 = vunpack.c.h.b16 %v913
        %v1186 = vunpack.c.l.b16 %v914
        %v1187 = vunpack.c.h.b16 %v914
        %v1188 = vunpack.c.l.b16 %v915
        %v1189 = vunpack.c.h.b16 %v915
        %v1190 = vunpack.c.l.b16 %v916
        %v1191 = vunpack.c.h.b16 %v916
        %v1192 = vunpack.c.l.b16 %v917
        %v1193 = vunpack.c.h.b16 %v917
        %v1194 = vunpack.c.l.b16 %v918
        %v1195 = vunpack.c.h.b16 %v918
        %v1196 = vunpack.c.l.b16 %v919
        %v1197 = vunpack.c.h.b16 %v919
        %v1198 = vunpack.c.l.b16 %v920
        %v1199 = vunpack.c.h.b16 %v920
        %v1200 = vunpack.c.l.b16 %v921
        %v1201 = vunpack.c.h.b16 %v921
        %v1202 = vunpack.c.l.b16 %v922
        %v1203 = vunpack.c.h.b16 %v922
        %v1204 = vunpack.c.l.b16 %v923
        %v1205 = vunpack.c.h.b16 %v923
        %v1206 = vunpack.c.l.b16 %v924
        %v1207 = vunpack.c.h.b16 %v924
        %v1208 = vunpack.c.l.b16 %v925
        %v1209 = vunpack.c.h.b16 %v925
        %v1210 = vunpack.c.l.b16 %v926
        %v1211 = vunpack.c.h.b16 %v926
        %v1212 = vunpack.c.l.b16 %v927
        %v1213 = vunpack.c.h.b16 %v927
        %v1214 = vunpack.c.l.b16 %v928
        %v1215 = vunpack.c.h.b16 %v928
        %v1216 = vunpack.c.l.b16 %v929
        %v1217 = vunpack.c.h.b16 %v929
        %v1218 = vunpack.c.l.b16 %v930
        %v1219 = vunpack.c.h.b16 %v930
        %v1220 = vunpack.c.l.b16 %v931
        %v1221 = vunpack.c.h.b16 %v931
        %v1222 = vunpack.c.l.b16 %v932
        %v1223 = vunpack.c.h.b16 %v932
        %v1224 = vunpack.c.l.b16 %v933
        %v1225 = vunpack.c.h.b16 %v933
        %v1226 = vunpack.c.l.b16 %v934
        %v1227 = vunpack.c.h.b16 %v934
        %v1228 = vunpack.c.l.b16 %v935
        %v1229 = vunpack.c.h.b16 %v935
        %v1230 = vunpack.c.l.b16 %v936
        %v1231 = vunpack.c.h.b16 %v936
        %v1232 = vunpack.c.l.b16 %v937
        %v1233 = vunpack.c.h.b16 %v937
        %v1234 = vunpack.c.l.b16 %v938
        %v1235 = vunpack.c.h.b16 %v938
        %v1236 = vunpack.c.l.b16 %v939
        %v1237 = vunpack.c.h.b16 %v939
        %v1238 = vunpack.c.l.b16 %v940
        %v1239 = vunpack.c.h.b16 %v940
        %v1240 = vunpack.c.l.b16 %v941
        %v1241 = vunpack.c.h.b16 %v941
        %v1242 = vunpack.c.l.b16 %v942
        %v1243 = vunpack.c.h.b16 %v942
        %v1244 = vunpack.c.l.b16 %v943
        %v1245 = vunpack.c.h.b16 %v943
        %v1246 = vunpack.c.l.b16 %v944
        %v1247 = vunpack.c.h.b16 %v944
        %v1248 = vunpack.c.l.b16 %v945
        %v1249 = vunpack.c.h.b16 %v945
        %v1250 = vunpack.c.l.b16 %v946
        %v1251 = vunpack.c.h.b16 %v946
        %v1252 = vunpack.c.l.b16 %v947
        %v1253 = vunpack.c.h.b16 %v947
        %v1254 = vunpack.c.l.b16 %v948
        %v1255 = vunpack.c.h.b16 %v948
        %v1256 = vunpack.c.l.b16 %v949
        %v1257 = vunpack.c.h.b16 %v949
        %v1258 = vunpack.c.l.b16 %v950
        %v1259 = vunpack.c.h.b16 %v950
        %v1260 = vunpack.c.l.b16 %v951
        %v1261 = vunpack.c.h.b16 %v951
        %v1262 = vunpack.c.l.b16 %v952
        %v1263 = vunpack.c.h.b16 %v952
        %v1264 = vunpack.c.l.b16 %v953
        %v1265 = vunpack.c.h.b16 %v953
        %v1266 = vunpack.c.l.b16 %v954
        %v1267 = vunpack.c.h.b16 %v954
        %v1268 = vunpack.c.l.b16 %v955
        %v1269 = vunpack.c.h.b16 %v955
        %v1270 = vunpack.c.l.b16 %v956
        %v1271 = vunpack.c.h.b16 %v956
        %v1272 = vunpack.c.l.b16 %v957
        %v1273 = vunpack.c.h.b16 %v957
        %v1274 = vunpack.c.l.b16 %v958
        %v1275 = vunpack.c.h.b16 %v958
        %v1276 = vunpack.c.l.b16 %v959
        %v1277 = vunpack.c.h.b16 %v959
        %v1278 = vunpack.c.l.b16 %v960
        %v1279 = vunpack.c.h.b16 %v960
        %v1280 = vunpack.c.l.b16 %v961
        %v1281 = vunpack.c.h.b16 %v961
        %v1282 = vunpack.c.l.b16 %v962
        %v1283 = vunpack.c.h.b16 %v962
        %v1284 = vunpack.c.l.b16 %v963
        %v1285 = vunpack.c.h.b16 %v963
        %v1286 = vunpack.c.l.b16 %v964
        %v1287 = vunpack.c.h.b16 %v964
        %v1288 = vunpack.c.l.b16 %v965
        %v1289 = vunpack.c.h.b16 %v965
        %v1290 = vunpack.c.l.b16 %v966
        %v1291 = vunpack.c.h.b16 %v966
        %v1292 = vunpack.c.l.b16 %v967
        %v1293 = vunpack.c.h.b16 %v967
        %v1294 = vunpack.c.l.b16 %v968
        %v1295 = vunpack.c.h.b16 %v968
        %v1296 = vunpack.c.l.b16 %v969
        %v1297 = vunpack.c.h.b16 %v969
        %v1298 = vunpack.c.l.b16 %v970
        %v1299 = vunpack.c.h.b16 %v970
        %v1300 = vunpack.c.l.b16 %v971
        %v1301 = vunpack.c.h.b16 %v971
        %v1302 = vunpack.c.l.b16 %v972
        %v1303 = vunpack.c.h.b16 %v972
        %v1304 = vunpack.c.l.b16 %v973
        %v1305 = vunpack.c.h.b16 %v973
        %v1306 = vunpack.c.l.b16 %v974
        %v1307 = vunpack.c.h.b16 %v974
        %v1308 = vunpack.c.l.b16 %v975
        %v1309 = vunpack.c.h.b16 %v975
        %v1310 = vunpack.c.l.b16 %v976
        %v1311 = vunpack.c.h.b16 %v976
        %v1312 = vunpack.c.l.b16 %v977
        %v1313 = vunpack.c.h.b16 %v977
        %v1314 = vunpack.c.l.b16 %v978
        %v1315 = vunpack.c.h.b16 %v978
        %v1316 = vunpack.c.l.b16 %v979
        %v1317 = vunpack.c.h.b16 %v979
        %v1318 = vunpack.c.l.b16 %v980
        %v1319 = vunpack.c.h.b16 %v980
        %v1320 = vunpack.c.l.b16 %v981
        %v1321 = vunpack.c.h.b16 %v981
        %v1322 = vunpack.c.l.b16 %v982
        %v1323 = vunpack.c.h.b16 %v982
        %v1324 = vunpack.c.l.b16 %v983
        %v1325 = vunpack.c.h.b16 %v983
        %v1326 = vunpack.c.l.b16 %v984
        %v1327 = vunpack.c.h.b16 %v984
        %v1328 = vunpack.c.l.b16 %v985
        %v1329 = vunpack.c.h.b16 %v985
        %v1330 = vunpack.c.l.b16 %v986
        %v1331 = vunpack.c.h.b16 %v986
        %v1332 = vunpack.c.l.b16 %v987
        %v1333 = vunpack.c.h.b16 %v987
        %v1334 = vunpack.c.l.b16 %v988
        %v1335 = vunpack.c.h.b16 %v988
        %v1336 = vunpack.c.l.b16 %v989
        %v1337 = vunpack.c.h.b16 %v989
        %v1338 = vunpack.c.l.b16 %v990
        %v1339 = vunpack.c.h.b16 %v990
        %v1340 = vunpack.c.l.b16 %v991
        %v1341 = vunpack.c.h.b16 %v991
        %v1342 = vunpack.c.l.b16 %v992
        %v1343 = vunpack.c.h.b16 %v992
        %v1344 = vunpack.c.l.b16 %v993
        %v1345 = vunpack.c.h.b16 %v993
        %v1346 = vunpack.c.l.b16 %v994
        %v1347 = vunpack.c.h.b16 %v994
        %v1348 = vunpack.c.l.b16 %v995
        %v1349 = vunpack.c.h.b16 %v995
        %v1350 = vunpack.c.l.b16 %v996
        %v1351 = vunpack.c.h.b16 %v996
        %v1352 = vunpack.c.l.b16 %v997
        %v1353 = vunpack.c.h.b16 %v997
        %v1354 = vunpack.c.l.b16 %v998
        %v1355 = vunpack.c.h.b16 %v998
        %v1356 = vunpack.c.l.b16 %v999
        %v1357 = vunpack.c.h.b16 %v999
        %v1358 = vunpack.c.l.b16 %v1000
        %v1359 = vunpack.c.h.b16 %v1000
        %v1360 = vunpack.c.l.b16 %v1001
        %v1361 = vunpack.c.h.b16 %v1001
        %v1362 = vunpack.c.l.b16 %v1002
        %v1363 = vunpack.c.h.b16 %v1002
        %v1364 = vunpack.c.l.b16 %v1003
        %v1365 = vunpack.c.h.b16 %v1003
        %v1366 = vunpack.c.l.b16 %v1004
        %v1367 = vunpack.c.h.b16 %v1004
        %v1368 = vunpack.c.l.b16 %v1005
        %v1369 = vunpack.c.h.b16 %v1005
        %v1370 = vunpack.c.l.b16 %v1006
        %v1371 = vunpack.c.h.b16 %v1006
        %v1372 = vunpack.c.l.b16 %v1007
        %v1373 = vunpack.c.h.b16 %v1007
        %v1374 = vunpack.c.l.b16 %v1008
        %v1375 = vunpack.c.h.b16 %v1008
        %v1376 = vunpack.c.l.b16 %v1009
        %v1377 = vunpack.c.h.b16 %v1009
        %v1378 = vunpack.c.l.b16 %v1010
        %v1379 = vunpack.c.h.b16 %v1010
        %v1380 = vunpack.c.l.b16 %v1011
        %v1381 = vunpack.c.h.b16 %v1011
        %v1382 = vunpack.c.l.b16 %v1012
        %v1383 = vunpack.c.h.b16 %v1012
        %v1384 = vunpack.c.l.b16 %v1013
        %v1385 = vunpack.c.h.b16 %v1013
        %v1386 = vunpack.c.l.b16 %v1014
        %v1387 = vunpack.c.h.b16 %v1014
        %v1388 = vunpack.c.l.b16 %v1015
        %v1389 = vunpack.c.h.b16 %v1015
        %v1390 = vunpack.c.l.b16 %v1016
        %v1391 = vunpack.c.h.b16 %v1016
        %v1392 = vunpack.c.l.b16 %v1017
        %v1393 = vunpack.c.h.b16 %v1017
        %v1394 = vunpack.c.l.b16 %v1018
        %v1395 = vunpack.c.h.b16 %v1018
        %v1396 = vunpack.c.l.b16 %v1019
        %v1397 = vunpack.c.h.b16 %v1019
        %v1398 = vunpack.c.l.b16 %v1020
        %v1399 = vunpack.c.h.b16 %v1020
        %v1400 = vunpack.c.l.b16 %v1021
        %v1401 = vunpack.c.h.b16 %v1021
        %v1402 = vunpack.c.l.b16 %v1022
        %v1403 = vunpack.c.h.b16 %v1022
        %v1404 = vunpack.c.l.b16 %v1023
        %v1405 = vunpack.c.h.b16 %v1023
        %v1406 = vunpack.c.l.b16 %v1024
        %v1407 = vunpack.c.h.b16 %v1024
        %v1408 = vunpack.c.l.b16 %v1025
        %v1409 = vunpack.c.h.b16 %v1025
        %v1410 = vpack.c.b16 %v1158, %v1154
        %v1411 = vpack.c.b16 %v1159, %v1155
        %v1412 = vpack.c.b16 %v1160, %v1156
        %v1413 = vpack.c.b16 %v1161, %v1157
        %v1414 = vpack.c.b16 %v1166, %v1162
        %v1415 = vpack.c.b16 %v1167, %v1163
        %v1416 = vpack.c.b16 %v1168, %v1164
        %v1417 = vpack.c.b16 %v1169, %v1165
        %v1418 = vpack.c.b16 %v1174, %v1170
        %v1419 = vpack.c.b16 %v1175, %v1171
        %v1420 = vpack.c.b16 %v1176, %v1172
        %v1421 = vpack.c.b16 %v1177, %v1173
        %v1422 = vpack.c.b16 %v1182, %v1178
        %v1423 = vpack.c.b16 %v1183, %v1179
        %v1424 = vpack.c.b16 %v1184, %v1180
        %v1425 = vpack.c.b16 %v1185, %v1181
        %v1426 = vpack.c.b16 %v1190, %v1186
        %v1427 = vpack.c.b16 %v1191, %v1187
        %v1428 = vpack.c.b16 %v1192, %v1188
        %v1429 = vpack.c.b16 %v1193, %v1189
        %v1430 = vpack.c.b16 %v1198, %v1194
        %v1431 = vpack.c.b16 %v1199, %v1195
        %v1432 = vpack.c.b16 %v1200, %v1196
        %v1433 = vpack.c.b16 %v1201, %v1197
        %v1434 = vpack.c.b16 %v1206, %v1202
        %v1435 = vpack.c.b16 %v1207, %v1203
        %v1436 = vpack.c.b16 %v1208, %v1204
        %v1437 = vpack.c.b16 %v1209, %v1205
        %v1438 = vpack.c.b16 %v1214, %v1210
        %v1439 = vpack.c.b16 %v1215, %v1211
        %v1440 = vpack.c.b16 %v1216, %v1212
        %v1441 = vpack.c.b16 %v1217, %v1213
        %v1442 = vpack.c.b16 %v1222, %v1218
        %v1443 = vpack.c.b16 %v1223, %v1219
        %v1444 = vpack.c.b16 %v1224, %v1220
        %v1445 = vpack.c.b16 %v1225, %v1221
        %v1446 = vpack.c.b16 %v1230, %v1226
        %v1447 = vpack.c.b16 %v1231, %v1227
        %v1448 = vpack.c.b16 %v1232, %v1228
        %v1449 = vpack.c.b16 %v1233, %v1229
        %v1450 = vpack.c.b16 %v1238, %v1234
        %v1451 = vpack.c.b16 %v1239, %v1235
        %v1452 = vpack.c.b16 %v1240, %v1236
        %v1453 = vpack.c.b16 %v1241, %v1237
        %v1454 = vpack.c.b16 %v1246, %v1242
        %v1455 = vpack.c.b16 %v1247, %v1243
        %v1456 = vpack.c.b16 %v1248, %v1244
        %v1457 = vpack.c.b16 %v1249, %v1245
        %v1458 = vpack.c.b16 %v1254, %v1250
        %v1459 = vpack.c.b16 %v1255, %v1251
        %v1460 = vpack.c.b16 %v1256, %v1252
        %v1461 = vpack.c.b16 %v1257, %v1253
        %v1462 = vpack.c.b16 %v1262, %v1258
        %v1463 = vpack.c.b16 %v1263, %v1259
        %v1464 = vpack.c.b16 %v1264, %v1260
        %v1465 = vpack.c.b16 %v1265, %v1261
        %v1466 = vpack.c.b16 %v1270, %v1266
        %v1467 = vpack.c.b16 %v1271, %v1267
        %v1468 = vpack.c.b16 %v1272, %v1268
        %v1469 = vpack.c.b16 %v1273, %v1269
        %v1470 = vpack.c.b16 %v1278, %v1274
        %v1471 = vpack.c.b16 %v1279, %v1275
        %v1472 = vpack.c.b16 %v1280, %v1276
        %v1473 = vpack.c.b16 %v1281, %v1277
        %v1474 = vpack.c.b16 %v1286, %v1282
        %v1475 = vpack.c.b16 %v1287, %v1283
        %v1476 = vpack.c.b16 %v1288, %v1284
        %v1477 = vpack.c.b16 %v1289, %v1285
        %v1478 = vpack.c.b16 %v1294, %v1290
        %v1479 = vpack.c.b16 %v1295, %v1291
        %v1480 = vpack.c.b16 %v1296, %v1292
        %v1481 = vpack.c.b16 %v1297, %v1293
        %v1482 = vpack.c.b16 %v1302, %v1298
        %v1483 = vpack.c.b16 %v1303, %v1299
        %v1484 = vpack.c.b16 %v1304, %v1300
        %v1485 = vpack.c.b16 %v1305, %v1301
        %v1486 = vpack.c.b16 %v1310, %v1306
        %v1487 = vpack.c.b16 %v1311, %v1307
        %v1488 = vpack.c.b16 %v1312, %v1308
        %v1489 = vpack.c.b16 %v1313, %v1309
        %v1490 = vpack.c.b16 %v1318, %v1314
        %v1491 = vpack.c.b16 %v1319, %v1315
        %v1492 = vpack.c.b16 %v1320, %v1316
        %v1493 = vpack.c.b16 %v1321, %v1317
        %v1494 = vpack.c.b16 %v1326, %v1322
        %v1495 = vpack.c.b16 %v1327, %v1323
        %v1496 = vpack.c.b16 %v1328, %v1324
        %v1497 = vpack.c.b16 %v1329, %v1325
        %v1498 = vpack.c.b16 %v1334, %v1330
        %v1499 = vpack.c.b16 %v1335, %v1331
        %v1500 = vpack.c.b16 %v1336, %v1332
        %v1501 = vpack.c.b16 %v1337, %v1333
        %v1502 = vpack.c.b16 %v1342, %v1338
        %v1503 = vpack.c.b16 %v1343, %v1339
        %v1504 = vpack.c.b16 %v1344, %v1340
        %v1505 = vpack.c.b16 %v1345, %v1341
        %v1506 = vpack.c.b16 %v1350, %v1346
        %v1507 = vpack.c.b16 %v1351, %v1347
        %v1508 = vpack.c.b16 %v1352, %v1348
        %v1509 = vpack.c.b16 %v1353, %v1349
        %v1510 = vpack.c.b16 %v1358, %v1354
        %v1511 = vpack.c.b16 %v1359, %v1355
        %v1512 = vpack.c.b16 %v1360, %v1356
        %v1513 = vpack.c.b16 %v1361, %v1357
        %v1514 = vpack.c.b16 %v1366, %v1362
        %v1515 = vpack.c.b16 %v1367, %v1363
        %v1516 = vpack.c.b16 %v1368, %v1364
        %v1517 = vpack.c.b16 %v1369, %v1365
        %v1518 = vpack.c.b16 %v1374, %v1370
        %v1519 = vpack.c.b16 %v1375, %v1371
        %v1520 = vpack.c.b16 %v1376, %v1372
        %v1521 = vpack.c.b16 %v1377, %v1373
        %v1522 = vpack.c.b16 %v1382, %v1378
        %v1523 = vpack.c.b16 %v1383, %v1379
        %v1524 = vpack.c.b16 %v1384, %v1380
        %v1525 = vpack.c.b16 %v1385, %v1381
        %v1526 = vpack.c.b16 %v1390, %v1386
        %v1527 = vpack.c.b16 %v1391, %v1387
        %v1528 = vpack.c.b16 %v1392, %v1388
        %v1529 = vpack.c.b16 %v1393, %v1389
        %v1530 = vpack.c.b16 %v1398, %v1394
        %v1531 = vpack.c.b16 %v1399, %v1395
        %v1532 = vpack.c.b16 %v1400, %v1396
        %v1533 = vpack.c.b16 %v1401, %v1397
        %v1534 = vpack.c.b16 %v1406, %v1402
        %v1535 = vpack.c.b16 %v1407, %v1403
        %v1536 = vpack.c.b16 %v1408, %v1404
        %v1537 = vpack.c.b16 %v1409, %v1405
        %1666 = vmatprep.subr.bf16.mxu0 %v1439
        %1667 = vmatpush1.bf16.msra.mxu0 %v1438
        %1668 = vmatprep.subr.bf16.mxu0 %v1435
        %1669 = vmatpush1.bf16.msra.mxu0 %v1434
        %1670 = vmatprep.subr.bf16.mxu0 %v1431
        %1671 = vmatpush1.bf16.msra.mxu0 %v1430
        %1672 = vmatprep.subr.bf16.mxu0 %v1427
        %1673 = vmatpush1.bf16.msra.mxu0 %v1426
        %1674 = vmatprep.subr.bf16.mxu0 %v1423
        %1675 = vmatpush1.bf16.msra.mxu0 %v1422
        %1676 = vmatprep.subr.bf16.mxu0 %v1419
        %1677 = vmatpush1.bf16.msra.mxu0 %v1418
        %1678 = vmatprep.subr.bf16.mxu0 %v1415
        %1679 = vmatpush1.bf16.msra.mxu0 %v1414
        %1680 = vmatprep.subr.bf16.mxu0 %v1411
        %1681 = vmatpush1.bf16.msra.mxu0 %v1410
        %1682 = vmatprep.subr.bf16.mxu0 %v1471
        %1683 = vmatpush2.bf16.msra.mxu0 %v1470
        %1684 = vmatprep.subr.bf16.mxu0 %v1467
        %1685 = vmatpush2.bf16.msra.mxu0 %v1466
        %1686 = vmatprep.subr.bf16.mxu0 %v1463
        %1687 = vmatpush2.bf16.msra.mxu0 %v1462
        %1688 = vmatprep.subr.bf16.mxu0 %v1459
        %1689 = vmatpush2.bf16.msra.mxu0 %v1458
        %1690 = vmatprep.subr.bf16.mxu0 %v1455
        %1691 = vmatpush2.bf16.msra.mxu0 %v1454
        %1692 = vmatprep.subr.bf16.mxu0 %v1451
        %1693 = vmatpush2.bf16.msra.mxu0 %v1450
        %1694 = vmatprep.subr.bf16.mxu0 %v1447
        %1695 = vmatpush2.bf16.msra.mxu0 %v1446
        %1696 = vmatprep.subr.bf16.mxu0 %v1443
        %1697 = vmatpush2.bf16.msra.mxu0 %v1442
        %1698 = vmatprep.mubr.bf16.mxu0 %v895
        %1699 = vmatmul.mubr.bf16.gmra.mxu0 %v894
        %v1700 = vpop.f32.mrf.mxu0
        %v1701 = vadd.f32 0.0, %v1700
        %v1702 = vpop.f32.mrf.mxu0
        %v1703 = vadd.f32 0.0, %v1702
        %v1704 = vpop.f32.mrf.mxu0
        %v1705 = vpop.f32.mrf.mxu0
        %1706 = vdwg.mxu0
        %1707 = vmatprep.subr.bf16.mxu0 %v1503
        %1708 = vmatpush1.bf16.msra.mxu0 %v1502
        %1709 = vmatprep.subr.bf16.mxu0 %v1499
        %1710 = vmatpush1.bf16.msra.mxu0 %v1498
        %1711 = vmatprep.subr.bf16.mxu0 %v1495
        %1712 = vmatpush1.bf16.msra.mxu0 %v1494
        %1713 = vmatprep.subr.bf16.mxu0 %v1491
        %1714 = vmatpush1.bf16.msra.mxu0 %v1490
        %1715 = vmatprep.subr.bf16.mxu0 %v1487
        %1716 = vmatpush1.bf16.msra.mxu0 %v1486
        %1717 = vmatprep.subr.bf16.mxu0 %v1483
        %1718 = vmatpush1.bf16.msra.mxu0 %v1482
        %1719 = vmatprep.subr.bf16.mxu0 %v1479
        %1720 = vmatpush1.bf16.msra.mxu0 %v1478
        %1721 = vmatprep.subr.bf16.mxu0 %v1475
        %1722 = vmatpush1.bf16.msra.mxu0 %v1474
        %1723 = vmatprep.subr.bf16.mxu0 %v1535
        %1724 = vmatpush2.bf16.msra.mxu0 %v1534
        %1725 = vmatprep.subr.bf16.mxu0 %v1531
        %1726 = vmatpush2.bf16.msra.mxu0 %v1530
        %1727 = vmatprep.subr.bf16.mxu0 %v1527
        %1728 = vmatpush2.bf16.msra.mxu0 %v1526
        %1729 = vmatprep.subr.bf16.mxu0 %v1523
        %1730 = vmatpush2.bf16.msra.mxu0 %v1522
        %1731 = vmatprep.subr.bf16.mxu0 %v1519
        %1732 = vmatpush2.bf16.msra.mxu0 %v1518
        %1733 = vmatprep.subr.bf16.mxu0 %v1515
        %1734 = vmatpush2.bf16.msra.mxu0 %v1514
        %1735 = vmatprep.subr.bf16.mxu0 %v1511
        %1736 = vmatpush2.bf16.msra.mxu0 %v1510
        %1737 = vmatprep.subr.bf16.mxu0 %v1507
        %1738 = vmatpush2.bf16.msra.mxu0 %v1506
        %1739 = vmatprep.mubr.bf16.mxu0 %v897
        %1740 = vmatmul.mubr.bf16.gmra.mxu0 %v896
        %v1741 = vpop.f32.mrf.mxu0
        %v1742 = vadd.f32 %v1701, %v1741
        %v1743 = vpop.f32.mrf.mxu0
        %v1744 = vadd.f32 %v1703, %v1743
        %v1745 = vpop.f32.mrf.mxu0
        %v1746 = vpop.f32.mrf.mxu0
        %1747 = vdwg.mxu0
        %1748 = vmatprep.subr.bf16.mxu0 %v1441
        %1749 = vmatpush1.bf16.msra.mxu0 %v1440
        %1750 = vmatprep.subr.bf16.mxu0 %v1437
        %1751 = vmatpush1.bf16.msra.mxu0 %v1436
        %1752 = vmatprep.subr.bf16.mxu0 %v1433
        %1753 = vmatpush1.bf16.msra.mxu0 %v1432
        %1754 = vmatprep.subr.bf16.mxu0 %v1429
        %1755 = vmatpush1.bf16.msra.mxu0 %v1428
        %1756 = vmatprep.subr.bf16.mxu0 %v1425
        %1757 = vmatpush1.bf16.msra.mxu0 %v1424
        %1758 = vmatprep.subr.bf16.mxu0 %v1421
        %1759 = vmatpush1.bf16.msra.mxu0 %v1420
        %1760 = vmatprep.subr.bf16.mxu0 %v1417
        %1761 = vmatpush1.bf16.msra.mxu0 %v1416
        %1762 = vmatprep.subr.bf16.mxu0 %v1413
        %1763 = vmatpush1.bf16.msra.mxu0 %v1412
        %1764 = vmatprep.subr.bf16.mxu0 %v1473
        %1765 = vmatpush2.bf16.msra.mxu0 %v1472
        %1766 = vmatprep.subr.bf16.mxu0 %v1469
        %1767 = vmatpush2.bf16.msra.mxu0 %v1468
        %1768 = vmatprep.subr.bf16.mxu0 %v1465
        %1769 = vmatpush2.bf16.msra.mxu0 %v1464
        %1770 = vmatprep.subr.bf16.mxu0 %v1461
        %1771 = vmatpush2.bf16.msra.mxu0 %v1460
        %1772 = vmatprep.subr.bf16.mxu0 %v1457
        %1773 = vmatpush2.bf16.msra.mxu0 %v1456
        %1774 = vmatprep.subr.bf16.mxu0 %v1453
        %1775 = vmatpush2.bf16.msra.mxu0 %v1452
        %1776 = vmatprep.subr.bf16.mxu0 %v1449
        %1777 = vmatpush2.bf16.msra.mxu0 %v1448
        %1778 = vmatprep.subr.bf16.mxu0 %v1445
        %1779 = vmatpush2.bf16.msra.mxu0 %v1444
        %1780 = vmatprep.mubr.bf16.mxu0 %v895
        %1781 = vmatmul.mubr.bf16.gmra.mxu0 %v894
        %v1782 = vpop.f32.mrf.mxu0
        %v1783 = vadd.f32 0.0, %v1782
        %v1784 = vpop.f32.mrf.mxu0
        %v1785 = vadd.f32 0.0, %v1784
        %v1786 = vpop.f32.mrf.mxu0
        %v1787 = vpop.f32.mrf.mxu0
        %1788 = vdwg.mxu0
        %1789 = vmatprep.subr.bf16.mxu0 %v1505
        %1790 = vmatpush1.bf16.msra.mxu0 %v1504
        %1791 = vmatprep.subr.bf16.mxu0 %v1501
        %1792 = vmatpush1.bf16.msra.mxu0 %v1500
        %1793 = vmatprep.subr.bf16.mxu0 %v1497
        %1794 = vmatpush1.bf16.msra.mxu0 %v1496
        %1795 = vmatprep.subr.bf16.mxu0 %v1493
        %1796 = vmatpush1.bf16.msra.mxu0 %v1492
        %1797 = vmatprep.subr.bf16.mxu0 %v1489
        %1798 = vmatpush1.bf16.msra.mxu0 %v1488
        %1799 = vmatprep.subr.bf16.mxu0 %v1485
        %1800 = vmatpush1.bf16.msra.mxu0 %v1484
        %1801 = vmatprep.subr.bf16.mxu0 %v1481
        %1802 = vmatpush1.bf16.msra.mxu0 %v1480
        %1803 = vmatprep.subr.bf16.mxu0 %v1477
        %1804 = vmatpush1.bf16.msra.mxu0 %v1476
        %1805 = vmatprep.subr.bf16.mxu0 %v1537
        %1806 = vmatpush2.bf16.msra.mxu0 %v1536
        %1807 = vmatprep.subr.bf16.mxu0 %v1533
        %1808 = vmatpush2.bf16.msra.mxu0 %v1532
        %1809 = vmatprep.subr.bf16.mxu0 %v1529
        %1810 = vmatpush2.bf16.msra.mxu0 %v1528
        %1811 = vmatprep.subr.bf16.mxu0 %v1525
        %1812 = vmatpush2.bf16.msra.mxu0 %v1524
        %1813 = vmatprep.subr.bf16.mxu0 %v1521
        %1814 = vmatpush2.bf16.msra.mxu0 %v1520
        %1815 = vmatprep.subr.bf16.mxu0 %v1517
        %1816 = vmatpush2.bf16.msra.mxu0 %v1516
        %1817 = vmatprep.subr.bf16.mxu0 %v1513
        %1818 = vmatpush2.bf16.msra.mxu0 %v1512
        %1819 = vmatprep.subr.bf16.mxu0 %v1509
        %1820 = vmatpush2.bf16.msra.mxu0 %v1508
        %1821 = vmatprep.mubr.bf16.mxu0 %v897
        %1822 = vmatmul.mubr.bf16.gmra.mxu0 %v896
        %v1823 = vpop.f32.mrf.mxu0
        %v1824 = vadd.f32 %v1783, %v1823
        %v1825 = vpop.f32.mrf.mxu0
        %v1826 = vadd.f32 %v1785, %v1825
        %v1827 = vpop.f32.mrf.mxu0
        %v1828 = vpop.f32.mrf.mxu0
        %1829 = vdwg.mxu0
        %v1830 = vld [vmem:[%s344] sm:$0xff]
        %v1831 = vrot.slane %v1742, 4
        %v1832 = vadd.f32 %v1742, %v1831
        %v1833 = vrot.slane %v1832, 2
        %v1834 = vadd.f32 %v1832, %v1833
        %v1835 = vrot.slane %v1834, 1
        %v1836 = vadd.f32 %v1834, %v1835
        %v1837 = vrot.slane %v1744, 4
        %v1838 = vadd.f32 %v1744, %v1837
        %v1839 = vrot.slane %v1838, 2
        %v1840 = vadd.f32 %v1838, %v1839
        %v1841 = vrot.slane %v1840, 1
        %v1842 = vadd.f32 %v1840, %v1841
        %v1843 = vrot.slane %v1824, 4
        %v1844 = vadd.f32 %v1824, %v1843
        %v1845 = vrot.slane %v1844, 2
        %v1846 = vadd.f32 %v1844, %v1845
        %v1847 = vrot.slane %v1846, 1
        %v1848 = vadd.f32 %v1846, %v1847
        %v1849 = vrot.slane %v1826, 4
        %v1850 = vadd.f32 %v1826, %v1849
        %v1851 = vrot.slane %v1850, 2
        %v1852 = vadd.f32 %v1850, %v1851
        %v1853 = vrot.slane %v1852, 1
        %v1854 = vadd.f32 %v1852, %v1853
        %v1855 = vrcp.pop 8.0
        %v1856 = vmul.f32 %v1836, %v1855
        %v1857 = vmul.f32 %v1842, %v1855
        %v1858 = vmul.f32 %v1848, %v1855
        %v1859 = vmul.f32 %v1854, %v1855
        %v1860 = vmul.f32 %v1742, %v1742
        %v1861 = vmul.f32 %v1744, %v1744
        %v1862 = vmul.f32 %v1824, %v1824
        %v1863 = vmul.f32 %v1826, %v1826
        %v1864 = vrot.slane %v1860, 4
        %v1865 = vadd.f32 %v1860, %v1864
        %v1866 = vrot.slane %v1865, 2
        %v1867 = vadd.f32 %v1865, %v1866
        %v1868 = vrot.slane %v1867, 1
        %v1869 = vadd.f32 %v1867, %v1868
        %v1870 = vrot.slane %v1861, 4
        %v1871 = vadd.f32 %v1861, %v1870
        %v1872 = vrot.slane %v1871, 2
        %v1873 = vadd.f32 %v1871, %v1872
        %v1874 = vrot.slane %v1873, 1
        %v1875 = vadd.f32 %v1873, %v1874
        %v1876 = vrot.slane %v1862, 4
        %v1877 = vadd.f32 %v1862, %v1876
        %v1878 = vrot.slane %v1877, 2
        %v1879 = vadd.f32 %v1877, %v1878
        %v1880 = vrot.slane %v1879, 1
        %v1881 = vadd.f32 %v1879, %v1880
        %v1882 = vrot.slane %v1863, 4
        %v1883 = vadd.f32 %v1863, %v1882
        %v1884 = vrot.slane %v1883, 2
        %v1885 = vadd.f32 %v1883, %v1884
        %v1886 = vrot.slane %v1885, 1
        %v1887 = vadd.f32 %v1885, %v1886
        %v1888 = vmul.f32 %v1869, %v1855
        %v1889 = vmul.f32 %v1875, %v1855
        %v1890 = vmul.f32 %v1881, %v1855
        %v1891 = vmul.f32 %v1887, %v1855
        %v1892 = vmul.f32 %v1856, %v1856
        %v1893 = vmul.f32 %v1857, %v1857
        %v1894 = vmul.f32 %v1858, %v1858
        %v1895 = vmul.f32 %v1859, %v1859
        %v1896 = vsub.f32 %v1888, %v1892
        %v1897 = vsub.f32 %v1889, %v1893
        %v1898 = vsub.f32 %v1890, %v1894
        %v1899 = vsub.f32 %v1891, %v1895
        %v1900 = vmax.f32 %v1896, 0.0
        %v1901 = vmax.f32 %v1897, 0.0
        %v1902 = vmax.f32 %v1898, 0.0
        %v1903 = vmax.f32 %v1899, 0.0
        %v1904 = vadd.f32 %v1900, 1e-05
        %v1905 = vadd.f32 %v1901, 1e-05
        %v1906 = vadd.f32 %v1902, 1e-05
        %v1907 = vadd.f32 %v1903, 1e-05
        %v1908 = vrsqrt.pop %v1904
        %v1909 = vrsqrt.pop %v1905
        %v1910 = vrsqrt.pop %v1906
        %v1911 = vrsqrt.pop %v1907
        %v1916 = vcombine.low %v1908, %v1909
        %v1917 = vcombine.low %v1910, %v1911
        %v1919 = vunpack.c.l.s4 1983009808
        %v1920 = vunpack.c.0.s8 %v1919
        %v1921 = vlaneseq
        %v1922 = vshrl.u32 %v1921, 7
        %v1923 = vsub.s32 %v1920, %v1922
        %v1924 = vrot.slane %v1916, %v1923
        %v1926 = vunpack.c.l.s4 1983009808
        %v1927 = vunpack.c.0.s8 %v1926
        %v1928 = vlaneseq
        %v1929 = vshrl.u32 %v1928, 7
        %v1930 = vsub.s32 %v1927, %v1929
        %v1931 = vrot.slane %v1917, %v1930
        %v1932 = vcombine.low %v1924, %v1931
        %v1934 = vmul.f32 %v1830, %v1932
        %v1936 = vlaneseq
        %v1937 = vshrl.u32 %v1936, 7
        %v1938 = vsub.s32 0, %v1937
        %v1939 = vrot.slane %v1934, %v1938
        %v1940 = vlaneseq
        %v1941 = vshrl.u32 %v1940, 7
        %v1942 = vsub.s32 2, %v1941
        %v1943 = vrot.slane %v1934, %v1942
        %v1944 = vlaneseq
        %v1945 = vshrl.u32 %v1944, 7
        %v1946 = vsub.s32 4, %v1945
        %v1947 = vrot.slane %v1934, %v1946
        %v1948 = vlaneseq
        %v1949 = vshrl.u32 %v1948, 7
        %v1950 = vsub.s32 6, %v1949
        %v1951 = vrot.slane %v1934, %v1950
        %v1956 = vmul.f32 %v1856, %v1939
        %v1957 = vmul.f32 %v1857, %v1943
        %v1958 = vmul.f32 %v1858, %v1947
        %v1959 = vmul.f32 %v1859, %v1951
        %v1964 = vcombine.low %v1956, %v1957
        %v1965 = vcombine.low %v1958, %v1959
        %v1967 = vunpack.c.l.s4 1983009808
        %v1968 = vunpack.c.0.s8 %v1967
        %v1969 = vlaneseq
        %v1970 = vshrl.u32 %v1969, 7
        %v1971 = vsub.s32 %v1968, %v1970
        %v1972 = vrot.slane %v1964, %v1971
        %v1974 = vunpack.c.l.s4 1983009808
        %v1975 = vunpack.c.0.s8 %v1974
        %v1976 = vlaneseq
        %v1977 = vshrl.u32 %v1976, 7
        %v1978 = vsub.s32 %v1975, %v1977
        %v1979 = vrot.slane %v1965, %v1978
        %v1980 = vcombine.low %v1972, %v1979
        %v1981 = vrot.slane %v1980, 7
        %v1983 = vsub.f32 %v1830, %v1981
        %v1984 = vlaneseq
        %v1985 = vshrl.u32 %v1984, 7
        %v1986 = vsub.s32 0, %v1985
        %v1987 = vrot.slane %v1939, %v1986
        %v1988 = vlaneseq
        %v1989 = vshrl.u32 %v1988, 7
        %v1990 = vsub.s32 0, %v1989
        %v1991 = vrot.slane %v1943, %v1990
        %v1992 = vlaneseq
        %v1993 = vshrl.u32 %v1992, 7
        %v1994 = vsub.s32 0, %v1993
        %v1995 = vrot.slane %v1947, %v1994
        %v1996 = vlaneseq
        %v1997 = vshrl.u32 %v1996, 7
        %v1998 = vsub.s32 0, %v1997
        %v1999 = vrot.slane %v1951, %v1998
        %v2000 = vmul.f32 %v1742, %v1987
        %v2001 = vmul.f32 %v1744, %v1991
        %v2002 = vmul.f32 %v1824, %v1995
        %v2003 = vmul.f32 %v1826, %v1999
        %v2005 = vlaneseq
        %v2006 = vshrl.u32 %v2005, 7
        %v2007 = vsub.s32 1, %v2006
        %v2008 = vrot.slane %v1983, %v2007
        %v2009 = vlaneseq
        %v2010 = vshrl.u32 %v2009, 7
        %v2011 = vsub.s32 3, %v2010
        %v2012 = vrot.slane %v1983, %v2011
        %v2013 = vlaneseq
        %v2014 = vshrl.u32 %v2013, 7
        %v2015 = vsub.s32 5, %v2014
        %v2016 = vrot.slane %v1983, %v2015
        %v2017 = vlaneseq
        %v2018 = vshrl.u32 %v2017, 7
        %v2019 = vsub.s32 7, %v2018
        %v2020 = vrot.slane %v1983, %v2019
        %v2025 = vlaneseq
        %v2026 = vshrl.u32 %v2025, 7
        %v2027 = vsub.s32 1, %v2026
        %v2028 = vrot.slane %v2008, %v2027
        %v2029 = vlaneseq
        %v2030 = vshrl.u32 %v2029, 7
        %v2031 = vsub.s32 1, %v2030
        %v2032 = vrot.slane %v2012, %v2031
        %v2033 = vlaneseq
        %v2034 = vshrl.u32 %v2033, 7
        %v2035 = vsub.s32 1, %v2034
        %v2036 = vrot.slane %v2016, %v2035
        %v2037 = vlaneseq
        %v2038 = vshrl.u32 %v2037, 7
        %v2039 = vsub.s32 1, %v2038
        %v2040 = vrot.slane %v2020, %v2039
        %v2041 = vadd.f32 %v2000, %v2028
        %v2042 = vadd.f32 %v2001, %v2032
        %v2043 = vadd.f32 %v2002, %v2036
        %v2044 = vadd.f32 %v2003, %v2040
        %2045 = vst [vmem:[#allocation2] sm:$0xff] %v2041
        %2046 = vst [vmem:[#allocation2 + $0x8] sm:$0xff] %v2042
        %2047 = vst [vmem:[#allocation2 + $0x10] sm:$0xff] %v2043
        %2048 = vst [vmem:[#allocation2 + $0x18] sm:$0xff] %v2044
        %p2049 = scmp.eq.s32.totalorder %s31, 2
        // Predicated region
        $region65: #{tpu_custom_call.1} parent=39 // pred_check
          %p2050 = pneg %p2049
        $region66: #{tpu_custom_call.1} parent=39 // pred_check_branch
          %2052 = sbr.rel (%p2050) target = $region68
        $region67: #{tpu_custom_call.1} parent=39 // pred_region
          %2053 = vst [vmem:[%s385] sm:$0xff] %v2041
          %2054 = vst [vmem:[%s385 + $0x8] sm:$0xff] %v2042
          %2055 = vst [vmem:[%s385 + $0x10] sm:$0xff] %v2043
          %2056 = vst [vmem:[%s385 + $0x18] sm:$0xff] %v2044
        $region68: #{tpu_custom_call.1} parent=39 // pred_fallthru
          _
        %s2057 = sand.u32 %s175, 1
        %s2058 = scalar_lea.sflag [#allocation5], %s2057
        %s2059 = sand.u32 %s175, 1
        %s2060 = smul.addr %s2059, 32
        %s2061 = scalar_lea.vmem [#allocation12], %s2060
        // Predicated region
        $region69: #{tpu_custom_call.1} parent=39 // pred_check
          %p2062 = pneg %p185
        $region70: #{tpu_custom_call.1} parent=39 // pred_check_branch
          %2064 = sbr.rel (%p2062) target = $region72
        $region71: #{tpu_custom_call.1} parent=39 // pred_region
          %s2066 = ssub.s32 512, 512
          %2067 = vsyncadd %s2058, %s2066
          %s2068 = smul.addr %s30, 4
          %s2069 = smul.addr %s2068, 128
          %s2070 = scalar_lea.hbm %s5, %s2069
          %s2072 = sshll.u32 %s2061, 4
          %s2073 = int_to_ptr.vmem [resolvable:$true] %s2072
          %2075 = dma.vmem_to_hbm [thread:$0]  %s2073, 512, %s2070, %s2058
        $region72: #{tpu_custom_call.1} parent=39 // pred_fallthru
          _
      $region40: #{tpu_custom_call.1} parent=5 // pred_fallthru
        _
      %p2076 = scmp.le.s32.totalorder 2, %s21
      // Predicated region
      $region73: #{tpu_custom_call.1} parent=5 // pred_check
        %p2077 = pneg %p2076
      $region74: #{tpu_custom_call.1} parent=5 // pred_check_branch
        %2079 = sbr.rel (%p2077) target = $region76
      $region75: #{tpu_custom_call.1} parent=5 // pred_region
        %s2080 = ssub.s32 %s21, 2
        // Predicated region
        $region77: #{tpu_custom_call.1} parent=75 // pred_check
          %p2081 = pneg %p191
        $region78: #{tpu_custom_call.1} parent=75 // pred_check_branch
          %2083 = sbr.rel (%p2081) target = $region80
        $region79: #{tpu_custom_call.1} parent=75 // pred_region
          %s2084 = sand.u32 %s176, 1
          %s2085 = scalar_lea.sflag [#allocation5], %s2084
          %s2086 = sand.u32 %s176, 1
          %s2087 = smul.addr %s2086, 32
          %s2088 = scalar_lea.vmem [#allocation12], %s2087
          %2089 = dma.done %s2085, 512
        $region80: #{tpu_custom_call.1} parent=75 // pred_fallthru
          _
      $region76: #{tpu_custom_call.1} parent=5 // pred_fallthru
        _
    $region6: #{tpu_custom_call.1} parent=1 // loop_footer
      %s25 = sadd.s32 1, %s21
    $region7: #{tpu_custom_call.1} parent=1 // loop_footer_branch
      %20 = sbr.rel target = $region3
    $region8: #{tpu_custom_call.1} parent=1 // loop_exit
      _
    %2090 = vsyncpa [#allocation4], 1
    %s2091 = scalar_lea.sflag [#allocation4], 1
    %2092 = vsyncpa %s2091, 1
    %2093 = vsyncpa [#allocation7], 1
    %s2094 = scalar_lea.sflag [#allocation7], 1
    %2095 = vsyncpa %s2094, 1
    %2096 = vsyncpa [#allocation10], 1
    %s2097 = scalar_lea.sflag [#allocation10], 1
    %2098 = vsyncpa %s2097, 1
    %2099 = vsyncpa [#allocation5], 1
    %s2100 = scalar_lea.sflag [#allocation5], 1
    %2101 = vsyncpa %s2100, 1

</llo_original>
